<compile_context>
chip_gen: v7x
topology: tpu7x:2x2x1
jax: 0.10.0
libtpu: 0.0.40
codegen_flags: <defaults>
</compile_context>

<pallas_src>
import jax
import jax.numpy as jnp
import numpy as np
from jax.experimental import pallas as pl
from jax.experimental.pallas import tpu as pltpu


# ----------------------------------------------------------------------------
# Pallas kernel: 3x3 same-padding conv + fused pixel_shuffle store for one
# (batch, row-tile) block.
# ----------------------------------------------------------------------------
def _conv3x3_ps_kernel(x_ref, xtop_ref, xbot_ref, w_ref, b_ref, o_ref, pad_ref):
    # x_ref:    (1, tH, W, Cin)       current row tile (unpadded)
    # xtop_ref: (1, 1,  W, Cin)       row just above the tile (clamped at top)
    # xbot_ref: (1, 1,  W, Cin)       row just below the tile (clamped at bottom)
    # w_ref:    (3, 3*Cin, f*f*C)     weights; rows (kw, cin), cols ordered (i, j, c)
    # b_ref:    (1, f*f*C)            bias (f32), same (i, j, c) column order
    # o_ref:    (1, tH, f, W, f*C)    fused pixel-shuffle output tile
    # pad_ref:  (tH+2, W+2, Cin)      VMEM scratch: zero-padded tile with halo
    i = pl.program_id(1)
    _, tH, W, Cin = x_ref.shape
    f = o_ref.shape[2]
    fC = o_ref.shape[4]            # f * C
    ffC = f * fC                   # f * f * C  (= Cout)

    # Interior rows.
    pad_ref[1:tH + 1, 1:W + 1, :] = x_ref[0]

    # Left/right zero-pad columns (covers the 4 corners too).  Cheap: only
    # 2*(tH+2)*Cin elements instead of zeroing the whole scratch.
    zcol = jnp.zeros((tH + 2, 1, Cin), dtype=pad_ref.dtype)
    pad_ref[:, 0:1, :] = zcol
    pad_ref[:, W + 1:W + 2, :] = zcol

    # Top/bottom halo rows: neighbour data inside the image, zeros at the
    # border.  Every element is rewritten each step (scratch persists across
    # grid iterations, so no stale data can leak into border tiles).
    @pl.when(i > 0)
    def _():
        pad_ref[0:1, 1:W + 1, :] = xtop_ref[0]

    @pl.when(i == 0)
    def _():
        pad_ref[0:1, 1:W + 1, :] = jnp.zeros_like(xtop_ref[0])

    @pl.when(i < pl.num_programs(1) - 1)
    def _():
        pad_ref[tH + 1:tH + 2, 1:W + 1, :] = xbot_ref[0]

    @pl.when(i == pl.num_programs(1) - 1)
    def _():
        pad_ref[tH + 1:tH + 2, 1:W + 1, :] = jnp.zeros_like(xbot_ref[0])

    # 3 accumulating MXU matmuls (one per kh), each with a (tH*W, 3*Cin) slab.
    acc = jnp.zeros((tH * W, ffC), jnp.float32)
    for kh in range(3):
        slab = jnp.concatenate(
            [pad_ref[kh:kh + tH, kw:kw + W, :] for kw in range(3)], axis=-1)
        slab = slab.reshape(tH * W, 3 * Cin)
        acc = acc + jnp.dot(slab, w_ref[kh], preferred_element_type=jnp.float32)

    # f32 epilogue (bias add) -- keeps v5e off emulated bf16 VPU ops.
    acc = acc + b_ref[...]

    # Fused pixel_shuffle store: for sub-row i the lanes [i*fC:(i+1)*fC] of
    # acc, reshaped (tH*W, fC) -> (tH, W, fC) (pure leading-dim split), are
    # exactly output rows h*f+i in (w, j, c) order.
    for sub in range(f):
        o_ref[0, :, sub] = (
            acc[:, sub * fC:(sub + 1) * fC].reshape(tH, W, fC).astype(o_ref.dtype))


# ----------------------------------------------------------------------------
# VMEM budget / row-tile selection
# ----------------------------------------------------------------------------
def _vmem_params():
    """(working-set budget, vmem_limit_bytes), derived from the chip when possible."""
    cap = None
    try:
        cap = getattr(pltpu.get_tpu_info(), "vmem_capacity_bytes", None)
    except Exception:
        cap = None
    if cap is None:
        # Safe everywhere (fits v7x's 64 MiB physical VMEM).
        return 10 * 1024 * 1024, 32 * 1024 * 1024
    limit = min(int(cap * 3 // 4), 96 * 1024 * 1024)     # v7x: 48 MiB, v5e/v6e: 96 MiB
    budget = min(limit // 3, 24 * 1024 * 1024)           # v7x: 16 MiB, v5e/v6e: 24 MiB
    return budget, limit


def _pick_row_tile(H, W, Cin, ffC, in_it, out_it, budget_bytes, want_even_nrt):
    """Largest divisor of H whose working set fits; prefers an even row-tile
    count when the batch is odd (megacore load balance on v7x)."""
    def working_set(tH):
        dbl = (tH * W * Cin * in_it            # x tile
               + 2 * W * Cin * in_it           # halo rows
               + 9 * Cin * ffC * in_it         # weights
               + 4 * ffC                       # bias (f32)
               + tH * W * ffC * out_it)        # output block
        single = ((tH + 2) * (W + 2) * Cin * in_it   # pad scratch (not double-buffered)
                  + tH * W * 3 * Cin * in_it         # per-kh im2col slab
                  + tH * W * ffC * 4)                # f32 accumulator
        return 2 * dbl + single
    divisors = [d for d in range(1, H + 1) if H % d == 0]
    fitting = [d for d in divisors if working_set(d) <= budget_bytes] or [1]
    if want_even_nrt:
        balanced = [d for d in fitting if (H // d) % 2 == 0]
        if balanced:
            return max(balanced)
    return max(fitting)


# ----------------------------------------------------------------------------
# Wrapper: fused 3x3 'same' conv + pixel_shuffle(f), NHWC.
#   x: (N, H, W, Cin); w: (3, 3, Cin, C*f*f); b: (C*f*f,)
#   returns (N, H*f, W*f, C)
# ----------------------------------------------------------------------------
def conv3x3_pixel_shuffle_nhwc(x, w_hwio, b, f, *, compute_dtype=None,
                               out_dtype=None, row_tile=None):
    N, H, W, Cin = x.shape
    Cout = w_hwio.shape[-1]
    assert Cout % (f * f) == 0
    C = Cout // (f * f)
    fC = f * C
    ffC = f * f * C

    cdt = jnp.dtype(compute_dtype) if compute_dtype is not None else x.dtype
    odt = jnp.dtype(out_dtype) if out_dtype is not None else cdt

    xc = x if x.dtype == cdt else x.astype(cdt)

    # Weight columns permuted (c, i, j) -> (i, j, c) so the fused store needs
    # no in-kernel channel shuffle; rows regrouped as (kh)(kw, cin).
    w_perm = (w_hwio.reshape(9 * Cin, C, f, f)
              .transpose(0, 2, 3, 1)
              .reshape(3, 3 * Cin, ffC)
              .astype(cdt))
    b_perm = (b.reshape(C, f, f).transpose(1, 2, 0).reshape(1, ffC)
              .astype(jnp.float32))

    budget, vmem_limit = _vmem_params()
    if row_tile is not None and H % row_tile == 0:
        tH = row_tile
    else:
        tH = _pick_row_tile(H, W, Cin, ffC, cdt.itemsize, odt.itemsize,
                            budget, want_even_nrt=(N % 2 == 1))
    nrt = H // tH

    # Halo rows come through two extra 1-row BlockSpecs on the same array
    # (block size 1 along H => block index == element row index).
    x_map = lambda n, i: (n, i, 0, 0)
    top_map = lambda n, i: (n, jnp.maximum(i * tH - 1, 0), 0, 0)
    bot_map = lambda n, i: (n, jnp.minimum((i + 1) * tH, H - 1), 0, 0)

    out = pl.pallas_call(
        _conv3x3_ps_kernel,
        out_shape=jax.ShapeDtypeStruct((N, H, f, W, fC), odt),
        grid_spec=pltpu.PrefetchScalarGridSpec(
            num_scalar_prefetch=0,
            grid=(N, nrt),
            in_specs=[
                pl.BlockSpec((1, tH, W, Cin), x_map),
                pl.BlockSpec((1, 1, W, Cin), top_map),
                pl.BlockSpec((1, 1, W, Cin), bot_map),
                pl.BlockSpec((3, 3 * Cin, ffC), lambda n, i: (0, 0, 0)),
                pl.BlockSpec((1, ffC), lambda n, i: (0, 0)),
            ],
            out_specs=pl.BlockSpec((1, tH, f, W, fC), lambda n, i: (n, i, 0, 0, 0)),
            scratch_shapes=[pltpu.VMEM((tH + 2, W + 2, Cin), cdt)],
        ),
        compiler_params=pltpu.CompilerParams(
            dimension_semantics=("parallel", "parallel"),
            vmem_limit_bytes=vmem_limit,
        ),
    )(xc, xc, xc, w_perm, b_perm)

    # (N, H, f, W, f*C) -> (N, H*f, W*f, C): adjacent-dim merges/splits only,
    # so this is a contiguous (free) reshape -- the pixel_shuffle itself never
    # makes a separate HBM pass.
    return out.reshape(N, H * f, W * f, C)


# ----------------------------------------------------------------------------
# pixel_shuffle in NHWC (reference only; same semantics as torch pixel_shuffle)
# ----------------------------------------------------------------------------
def pixel_shuffle_nhwc(x, r):
    N, H, W, Crr = x.shape
    C = Crr // (r * r)
    x = x.reshape(N, H, W, C, r, r)
    x = x.transpose(0, 1, 4, 2, 5, 3)          # (N, H, r, W, r, C)
    return x.reshape(N, H * r, W * r, C)


# ----------------------------------------------------------------------------
# Module equivalent of SR_upsampling
# ----------------------------------------------------------------------------
class SRUpsampling:
    def __init__(self, num_filters, factor=2, key=None, row_tile=None):
        self.f = 2 if factor == 4 else factor
        self.factor = factor
        self.row_tile = row_tile
        cout = num_filters * self.f ** 2
        key = jax.random.PRNGKey(0) if key is None else key
        k1, k2, k3, k4 = jax.random.split(key, 4)
        self.w1 = 0.1 * jax.random.normal(k1, (3, 3, num_filters, cout), jnp.float32)
        self.b1 = 0.1 * jax.random.normal(k2, (cout,), jnp.float32)
        self.w2 = None
        self.b2 = None
        if factor == 4:
            self.w2 = 0.1 * jax.random.normal(k3, (3, 3, num_filters, cout), jnp.float32)
            self.b2 = 0.1 * jax.random.normal(k4, (cout,), jnp.float32)

    def __call__(self, x_nchw, compute_dtype=None):
        # NCHW -> NHWC (layout plumbing only).
        x = jnp.transpose(x_nchw, (0, 2, 3, 1))
        last = self.w2 is None
        out = conv3x3_pixel_shuffle_nhwc(
            x, self.w1, self.b1, self.f,
            compute_dtype=compute_dtype,
            out_dtype=(x_nchw.dtype if last else None),   # intermediate stays in compute dtype
            row_tile=self.row_tile)
        if self.w2 is not None:
            out = conv3x3_pixel_shuffle_nhwc(
                out, self.w2, self.b2, self.f,
                compute_dtype=compute_dtype,
                out_dtype=x_nchw.dtype,
                row_tile=self.row_tile)
        return jnp.transpose(out, (0, 3, 1, 2))   # back to NCHW


# ----------------------------------------------------------------------------
# Pure-JAX reference (lax conv + explicit pixel_shuffle) for correctness check
# ----------------------------------------------------------------------------
def _conv3x3_ref(x_nhwc, w_hwio, b):
    y = jax.lax.conv_general_dilated(
        x_nhwc, w_hwio, window_strides=(1, 1), padding="SAME",
        dimension_numbers=("NHWC", "HWIO", "NHWC"))
    return y + b.reshape(1, 1, 1, -1)


def _forward_ref(mod, x_nchw):
    x = jnp.transpose(x_nchw, (0, 2, 3, 1))
    out = _conv3x3_ref(x, mod.w1, mod.b1)
    out = pixel_shuffle_nhwc(out, mod.f)
    if mod.w2 is not None:
        out = _conv3x3_ref(out, mod.w2, mod.b2)
        out = pixel_shuffle_nhwc(out, mod.f)
    return jnp.transpose(out, (0, 3, 1, 2))


if __name__ == "__main__":
    key = jax.random.PRNGKey(0)
    kx, kp = jax.random.split(key)

    N, C, H, W = 2, 4, 16, 16
    factor = 4                                  # exercises both conv/shuffle stages
    x = jax.random.normal(kx, (N, C, H, W), jnp.float32)   # NCHW like PyTorch

    # row_tile=8 -> 2 row tiles in stage 1 and 4 in stage 2 (exercises halos).
    model = SRUpsampling(num_filters=C, factor=factor, key=kp, row_tile=8)

    out = jax.block_until_ready(model(x))
    assert out.shape == (N, C, H * factor, W * factor), out.shape

    ref = jax.block_until_ready(_forward_ref(model, x))
    np.testing.assert_allclose(np.asarray(out), np.asarray(ref), atol=1e-4, rtol=1e-4)

    # bf16 MXU path (recommended on v5e/v6e/v7x): bf16 activations/weights and
    # bf16 intermediate stage output, f32 accumulation + f32 epilogue.
    out_bf16 = jax.block_until_ready(model(x, compute_dtype=jnp.bfloat16))
    np.testing.assert_allclose(np.asarray(out_bf16), np.asarray(ref),
                               atol=5e-2, rtol=5e-2)

    print("KERNEL_OK")
</pallas_src>

<mosaic_0001>
module attributes {stable_mosaic.version = 11 : i64} {
  func.func @_conv3x3_ps_kernel(%arg0: i32, %arg1: i32, %arg2: memref<1x8x16x4xf32, #tpu.memory_space<vmem>>, %arg3: memref<1x1x16x4xf32, #tpu.memory_space<vmem>>, %arg4: memref<1x1x16x4xf32, #tpu.memory_space<vmem>>, %arg5: memref<3x12x16xf32, #tpu.memory_space<vmem>>, %arg6: memref<1x16xf32, #tpu.memory_space<vmem>>, %arg7: memref<1x8x2x16x8xf32, #tpu.memory_space<vmem>>, %arg8: memref<10x18x4xf32, #tpu.memory_space<vmem>>) attributes {dimension_semantics = [#tpu.dimension_semantics<parallel>, #tpu.dimension_semantics<parallel>], iteration_bounds = array<i64: 2, 2>, scalar_prefetch = 0 : i64, scratch_operands = 1 : i64, tpu.core_type = #tpu.core_type<tc>, window_params = [{transform_indices = @transform_0, window_bounds = array<i64: 1, 8, 16, 4>}, {transform_indices = @transform_1, window_bounds = array<i64: 1, 1, 16, 4>}, {transform_indices = @transform_2, window_bounds = array<i64: 1, 1, 16, 4>}, {pipeline_mode = #tpu.pipeline_mode<synchronous>, transform_indices = @transform_3, window_bounds = array<i64: 3, 12, 16>}, {pipeline_mode = #tpu.pipeline_mode<synchronous>, transform_indices = @transform_4, window_bounds = array<i64: 1, 16>}, {transform_indices = @transform_5, window_bounds = array<i64: 1, 8, 2, 16, 8>}]} {
    %c0 = arith.constant 0 : index
    %c0_0 = arith.constant 0 : index
    %c0_1 = arith.constant 0 : index
    %c0_2 = arith.constant 0 : index
    %0 = vector.load %arg2[%c0, %c0_0, %c0_1, %c0_2] : memref<1x8x16x4xf32, #tpu.memory_space<vmem>>, vector<1x8x16x4xf32>
    %1 = vector.shape_cast %0 : vector<1x8x16x4xf32> to vector<8x16x4xf32>
    %c1 = arith.constant 1 : index
    %c1_3 = arith.constant 1 : index
    %c0_4 = arith.constant 0 : index
    %2 = vector.load %arg8[%c1, %c1_3, %c0_4] : memref<10x18x4xf32, #tpu.memory_space<vmem>>, vector<8x16x4xf32>
    tpu.vector_store %arg8[%c1, %c1_3, %c0_4], %1 {strides = array<i32>} : memref<10x18x4xf32, #tpu.memory_space<vmem>>, vector<8x16x4xf32>,
    %cst = arith.constant 0.000000e+00 : f32
    %3 = vector.broadcast %cst : f32 to vector<10x1x4xf32>
    %c0_5 = arith.constant 0 : index
    %c0_6 = arith.constant 0 : index
    %c0_7 = arith.constant 0 : index
    %4 = vector.load %arg8[%c0_5, %c0_6, %c0_7] : memref<10x18x4xf32, #tpu.memory_space<vmem>>, vector<10x1x4xf32>
    tpu.vector_store %arg8[%c0_5, %c0_6, %c0_7], %3 {strides = array<i32>} : memref<10x18x4xf32, #tpu.memory_space<vmem>>, vector<10x1x4xf32>,
    %c0_8 = arith.constant 0 : index
    %c17 = arith.constant 17 : index
    %c0_9 = arith.constant 0 : index
    %5 = vector.load %arg8[%c0_8, %c17, %c0_9] : memref<10x18x4xf32, #tpu.memory_space<vmem>>, vector<10x1x4xf32>
    tpu.vector_store %arg8[%c0_8, %c17, %c0_9], %3 {strides = array<i32>} : memref<10x18x4xf32, #tpu.memory_space<vmem>>, vector<10x1x4xf32>,
    %c0_i32 = arith.constant 0 : i32
    %6 = arith.cmpi sgt, %arg1, %c0_i32 : i32
    %7 = arith.extui %6 : i1 to i32
    %c0_i32_10 = arith.constant 0 : i32
    %8 = arith.cmpi ne, %7, %c0_i32_10 : i32
    scf.if %8 {
      %c0_67 = arith.constant 0 : index
      %c0_68 = arith.constant 0 : index
      %c0_69 = arith.constant 0 : index
      %c0_70 = arith.constant 0 : index
      %59 = vector.load %arg3[%c0_67, %c0_68, %c0_69, %c0_70] : memref<1x1x16x4xf32, #tpu.memory_space<vmem>>, vector<1x1x16x4xf32>
      %60 = vector.shape_cast %59 : vector<1x1x16x4xf32> to vector<1x16x4xf32>
      %c0_71 = arith.constant 0 : index
      %c1_72 = arith.constant 1 : index
      %c0_73 = arith.constant 0 : index
      %61 = vector.load %arg8[%c0_71, %c1_72, %c0_73] : memref<10x18x4xf32, #tpu.memory_space<vmem>>, vector<1x16x4xf32>
      tpu.vector_store %arg8[%c0_71, %c1_72, %c0_73], %60 {strides = array<i32>} : memref<10x18x4xf32, #tpu.memory_space<vmem>>, vector<1x16x4xf32>,
    } else {
    }
    %c0_i32_11 = arith.constant 0 : i32
    %9 = arith.cmpi eq, %arg1, %c0_i32_11 : i32
    %10 = arith.extui %9 : i1 to i32
    %c0_i32_12 = arith.constant 0 : i32
    %11 = arith.cmpi ne, %10, %c0_i32_12 : i32
    scf.if %11 {
      %cst_67 = arith.constant 0.000000e+00 : f32
      %59 = vector.broadcast %cst_67 : f32 to vector<1x16x4xf32>
      %c0_68 = arith.constant 0 : index
      %c1_69 = arith.constant 1 : index
      %c0_70 = arith.constant 0 : index
      %60 = vector.load %arg8[%c0_68, %c1_69, %c0_70] : memref<10x18x4xf32, #tpu.memory_space<vmem>>, vector<1x16x4xf32>
      tpu.vector_store %arg8[%c0_68, %c1_69, %c0_70], %59 {strides = array<i32>} : memref<10x18x4xf32, #tpu.memory_space<vmem>>, vector<1x16x4xf32>,
    } else {
    }
    %c1_i32 = arith.constant 1 : i32
    %12 = arith.cmpi slt, %arg1, %c1_i32 : i32
    %13 = arith.extui %12 : i1 to i32
    %c0_i32_13 = arith.constant 0 : i32
    %14 = arith.cmpi ne, %13, %c0_i32_13 : i32
    scf.if %14 {
      %c0_67 = arith.constant 0 : index
      %c0_68 = arith.constant 0 : index
      %c0_69 = arith.constant 0 : index
      %c0_70 = arith.constant 0 : index
      %59 = vector.load %arg4[%c0_67, %c0_68, %c0_69, %c0_70] : memref<1x1x16x4xf32, #tpu.memory_space<vmem>>, vector<1x1x16x4xf32>
      %60 = vector.shape_cast %59 : vector<1x1x16x4xf32> to vector<1x16x4xf32>
      %c9 = arith.constant 9 : index
      %c1_71 = arith.constant 1 : index
      %c0_72 = arith.constant 0 : index
      %61 = vector.load %arg8[%c9, %c1_71, %c0_72] : memref<10x18x4xf32, #tpu.memory_space<vmem>>, vector<1x16x4xf32>
      tpu.vector_store %arg8[%c9, %c1_71, %c0_72], %60 {strides = array<i32>} : memref<10x18x4xf32, #tpu.memory_space<vmem>>, vector<1x16x4xf32>,
    } else {
    }
    %c1_i32_14 = arith.constant 1 : i32
    %15 = arith.cmpi eq, %arg1, %c1_i32_14 : i32
    %16 = arith.extui %15 : i1 to i32
    %c0_i32_15 = arith.constant 0 : i32
    %17 = arith.cmpi ne, %16, %c0_i32_15 : i32
    scf.if %17 {
      %cst_67 = arith.constant 0.000000e+00 : f32
      %59 = vector.broadcast %cst_67 : f32 to vector<1x16x4xf32>
      %c9 = arith.constant 9 : index
      %c1_68 = arith.constant 1 : index
      %c0_69 = arith.constant 0 : index
      %60 = vector.load %arg8[%c9, %c1_68, %c0_69] : memref<10x18x4xf32, #tpu.memory_space<vmem>>, vector<1x16x4xf32>
      tpu.vector_store %arg8[%c9, %c1_68, %c0_69], %59 {strides = array<i32>} : memref<10x18x4xf32, #tpu.memory_space<vmem>>, vector<1x16x4xf32>,
    } else {
    }
    %cst_16 = arith.constant 0.000000e+00 : f32
    %18 = vector.broadcast %cst_16 : f32 to vector<128x16xf32>
    %c0_17 = arith.constant 0 : index
    %c0_18 = arith.constant 0 : index
    %c0_19 = arith.constant 0 : index
    %19 = vector.load %arg8[%c0_17, %c0_18, %c0_19] : memref<10x18x4xf32, #tpu.memory_space<vmem>>, vector<8x16x4xf32>
    %c0_20 = arith.constant 0 : index
    %c1_21 = arith.constant 1 : index
    %c0_22 = arith.constant 0 : index
    %20 = vector.load %arg8[%c0_20, %c1_21, %c0_22] : memref<10x18x4xf32, #tpu.memory_space<vmem>>, vector<8x16x4xf32>
    %c0_23 = arith.constant 0 : index
    %c2 = arith.constant 2 : index
    %c0_24 = arith.constant 0 : index
    %21 = vector.load %arg8[%c0_23, %c2, %c0_24] : memref<10x18x4xf32, #tpu.memory_space<vmem>>, vector<8x16x4xf32>
    %22 = tpu.concatenate %19, %20, %21 in 2 : vector<8x16x4xf32>, vector<8x16x4xf32>, vector<8x16x4xf32> -> vector<8x16x12xf32>
    %23 = vector.shape_cast %22 : vector<8x16x12xf32> to vector<128x12xf32>
    %c0_25 = arith.constant 0 : index
    %c0_26 = arith.constant 0 : index
    %c0_27 = arith.constant 0 : index
    %24 = vector.load %arg5[%c0_25, %c0_26, %c0_27] : memref<3x12x16xf32, #tpu.memory_space<vmem>>, vector<1x12x16xf32>
    %25 = vector.shape_cast %24 : vector<1x12x16xf32> to vector<12x16xf32>
    %cst_28 = arith.constant dense<0.000000e+00> : vector<128x16xf32>
    %26 = tpu.matmul %23, %25, %cst_28 {dimension_numbers = #tpu.dot_dimension_numbers<[1], [0], [0], [1], [0, 0, 1, 1], [], []>} : vector<128x12xf32>, vector<12x16xf32>, vector<128x16xf32> -> vector<128x16xf32>
    %27 = arith.addf %18, %26 : vector<128x16xf32>
    %c1_29 = arith.constant 1 : index
    %c0_30 = arith.constant 0 : index
    %c0_31 = arith.constant 0 : index
    %28 = vector.load %arg8[%c1_29, %c0_30, %c0_31] : memref<10x18x4xf32, #tpu.memory_space<vmem>>, vector<8x16x4xf32>
    %c1_32 = arith.constant 1 : index
    %c1_33 = arith.constant 1 : index
    %c0_34 = arith.constant 0 : index
    %29 = vector.load %arg8[%c1_32, %c1_33, %c0_34] : memref<10x18x4xf32, #tpu.memory_space<vmem>>, vector<8x16x4xf32>
    %c1_35 = arith.constant 1 : index
    %c2_36 = arith.constant 2 : index
    %c0_37 = arith.constant 0 : index
    %30 = vector.load %arg8[%c1_35, %c2_36, %c0_37] : memref<10x18x4xf32, #tpu.memory_space<vmem>>, vector<8x16x4xf32>
    %31 = tpu.concatenate %28, %29, %30 in 2 : vector<8x16x4xf32>, vector<8x16x4xf32>, vector<8x16x4xf32> -> vector<8x16x12xf32>
    %32 = vector.shape_cast %31 : vector<8x16x12xf32> to vector<128x12xf32>
    %c1_38 = arith.constant 1 : index
    %c0_39 = arith.constant 0 : index
    %c0_40 = arith.constant 0 : index
    %33 = vector.load %arg5[%c1_38, %c0_39, %c0_40] : memref<3x12x16xf32, #tpu.memory_space<vmem>>, vector<1x12x16xf32>
    %34 = vector.shape_cast %33 : vector<1x12x16xf32> to vector<12x16xf32>
    %cst_41 = arith.constant dense<0.000000e+00> : vector<128x16xf32>
    %35 = tpu.matmul %32, %34, %cst_41 {dimension_numbers = #tpu.dot_dimension_numbers<[1], [0], [0], [1], [0, 0, 1, 1], [], []>} : vector<128x12xf32>, vector<12x16xf32>, vector<128x16xf32> -> vector<128x16xf32>
    %36 = arith.addf %27, %35 : vector<128x16xf32>
    %c2_42 = arith.constant 2 : index
    %c0_43 = arith.constant 0 : index
    %c0_44 = arith.constant 0 : index
    %37 = vector.load %arg8[%c2_42, %c0_43, %c0_44] : memref<10x18x4xf32, #tpu.memory_space<vmem>>, vector<8x16x4xf32>
    %c2_45 = arith.constant 2 : index
    %c1_46 = arith.constant 1 : index
    %c0_47 = arith.constant 0 : index
    %38 = vector.load %arg8[%c2_45, %c1_46, %c0_47] : memref<10x18x4xf32, #tpu.memory_space<vmem>>, vector<8x16x4xf32>
    %c2_48 = arith.constant 2 : index
    %c2_49 = arith.constant 2 : index
    %c0_50 = arith.constant 0 : index
    %39 = vector.load %arg8[%c2_48, %c2_49, %c0_50] : memref<10x18x4xf32, #tpu.memory_space<vmem>>, vector<8x16x4xf32>
    %40 = tpu.concatenate %37, %38, %39 in 2 : vector<8x16x4xf32>, vector<8x16x4xf32>, vector<8x16x4xf32> -> vector<8x16x12xf32>
    %41 = vector.shape_cast %40 : vector<8x16x12xf32> to vector<128x12xf32>
    %c2_51 = arith.constant 2 : index
    %c0_52 = arith.constant 0 : index
    %c0_53 = arith.constant 0 : index
    %42 = vector.load %arg5[%c2_51, %c0_52, %c0_53] : memref<3x12x16xf32, #tpu.memory_space<vmem>>, vector<1x12x16xf32>
    %43 = vector.shape_cast %42 : vector<1x12x16xf32> to vector<12x16xf32>
    %cst_54 = arith.constant dense<0.000000e+00> : vector<128x16xf32>
    %44 = tpu.matmul %41, %43, %cst_54 {dimension_numbers = #tpu.dot_dimension_numbers<[1], [0], [0], [1], [0, 0, 1, 1], [], []>} : vector<128x12xf32>, vector<12x16xf32>, vector<128x16xf32> -> vector<128x16xf32>
    %45 = arith.addf %36, %44 : vector<128x16xf32>
    %c0_55 = arith.constant 0 : index
    %c0_56 = arith.constant 0 : index
    %46 = vector.load %arg6[%c0_55, %c0_56] : memref<1x16xf32, #tpu.memory_space<vmem>>, vector<1x16xf32>
    %47 = vector.broadcast %46 : vector<1x16xf32> to vector<128x16xf32>
    %48 = arith.addf %45, %47 : vector<128x16xf32>
    %49 = vector.extract_strided_slice %48 {offsets = [0, 0], sizes = [128, 8], strides = [1, 1]} : vector<128x16xf32> to vector<128x8xf32>
    %50 = vector.shape_cast %49 : vector<128x8xf32> to vector<8x16x8xf32>
    %c0_57 = arith.constant 0 : index
    %c0_58 = arith.constant 0 : index
    %c0_59 = arith.constant 0 : index
    %c0_60 = arith.constant 0 : index
    %c0_61 = arith.constant 0 : index
    %51 = vector.load %arg7[%c0_57, %c0_58, %c0_59, %c0_60, %c0_61] : memref<1x8x2x16x8xf32, #tpu.memory_space<vmem>>, vector<1x8x1x16x8xf32>
    %52 = vector.shape_cast %51 : vector<1x8x1x16x8xf32> to vector<8x16x8xf32>
    %53 = vector.shape_cast %50 : vector<8x16x8xf32> to vector<1x8x1x16x8xf32>
    tpu.vector_store %arg7[%c0_57, %c0_58, %c0_59, %c0_60, %c0_61], %53 {strides = array<i32>} : memref<1x8x2x16x8xf32, #tpu.memory_space<vmem>>, vector<1x8x1x16x8xf32>,
    %54 = vector.extract_strided_slice %48 {offsets = [0, 8], sizes = [128, 8], strides = [1, 1]} : vector<128x16xf32> to vector<128x8xf32>
    %55 = vector.shape_cast %54 : vector<128x8xf32> to vector<8x16x8xf32>
    %c0_62 = arith.constant 0 : index
    %c0_63 = arith.constant 0 : index
    %c1_64 = arith.constant 1 : index
    %c0_65 = arith.constant 0 : index
    %c0_66 = arith.constant 0 : index
    %56 = vector.load %arg7[%c0_62, %c0_63, %c1_64, %c0_65, %c0_66] : memref<1x8x2x16x8xf32, #tpu.memory_space<vmem>>, vector<1x8x1x16x8xf32>
    %57 = vector.shape_cast %56 : vector<1x8x1x16x8xf32> to vector<8x16x8xf32>
    %58 = vector.shape_cast %55 : vector<8x16x8xf32> to vector<1x8x1x16x8xf32>
    tpu.vector_store %arg7[%c0_62, %c0_63, %c1_64, %c0_65, %c0_66], %58 {strides = array<i32>} : memref<1x8x2x16x8xf32, #tpu.memory_space<vmem>>, vector<1x8x1x16x8xf32>,
    return
  }
  func.func @transform_0(%arg0: i32, %arg1: i32) -> (i32, i32, i32, i32) {
    %c0_i32 = arith.constant 0 : i32
    %c0_i32_0 = arith.constant 0 : i32
    %c0_i32_1 = arith.constant 0 : i32
    return %arg0, %arg1, %c0_i32, %c0_i32_0 : i32, i32, i32, i32
  }
  func.func @transform_1(%arg0: i32, %arg1: i32) -> (i32, i32, i32, i32) {
    %c8_i32 = arith.constant 8 : i32
    %0 = arith.muli %arg1, %c8_i32 : i32
    %c1_i32 = arith.constant 1 : i32
    %1 = arith.subi %0, %c1_i32 : i32
    %c0_i32 = arith.constant 0 : i32
    %2 = arith.maxsi %1, %c0_i32 : i32
    %c0_i32_0 = arith.constant 0 : i32
    %c0_i32_1 = arith.constant 0 : i32
    %c0_i32_2 = arith.constant 0 : i32
    return %arg0, %2, %c0_i32_0, %c0_i32_1 : i32, i32, i32, i32
  }
  func.func @transform_2(%arg0: i32, %arg1: i32) -> (i32, i32, i32, i32) {
    %c1_i32 = arith.constant 1 : i32
    %0 = arith.addi %arg1, %c1_i32 : i32
    %c8_i32 = arith.constant 8 : i32
    %1 = arith.muli %0, %c8_i32 : i32
    %c15_i32 = arith.constant 15 : i32
    %2 = arith.minsi %1, %c15_i32 : i32
    %c0_i32 = arith.constant 0 : i32
    %c0_i32_0 = arith.constant 0 : i32
    %c0_i32_1 = arith.constant 0 : i32
    return %arg0, %2, %c0_i32, %c0_i32_0 : i32, i32, i32, i32
  }
  func.func @transform_3(%arg0: i32, %arg1: i32) -> (i32, i32, i32) {
    %c0_i32 = arith.constant 0 : i32
    %c0_i32_0 = arith.constant 0 : i32
    %c0_i32_1 = arith.constant 0 : i32
    %c0_i32_2 = arith.constant 0 : i32
    return %c0_i32, %c0_i32_0, %c0_i32_1 : i32, i32, i32
  }
  func.func @transform_4(%arg0: i32, %arg1: i32) -> (i32, i32) {
    %c0_i32 = arith.constant 0 : i32
    %c0_i32_0 = arith.constant 0 : i32
    %c0_i32_1 = arith.constant 0 : i32
    return %c0_i32, %c0_i32_0 : i32, i32
  }
  func.func @transform_5(%arg0: i32, %arg1: i32) -> (i32, i32, i32, i32, i32) {
    %c0_i32 = arith.constant 0 : i32
    %c0_i32_0 = arith.constant 0 : i32
    %c0_i32_1 = arith.constant 0 : i32
    %c0_i32_2 = arith.constant 0 : i32
    return %arg0, %arg1, %c0_i32, %c0_i32_0, %c0_i32_1 : i32, i32, i32, i32, i32
  }
}

</mosaic_0001>

<llo_original>
// kernel: tpu_custom_call.1
$region0: #{tpu_custom_call.1}
  #allocation0 [shape = 'u32[]', space=smem, size = 0x4, offset = 0x4, fixed_abs, tag = 'smem constant byte address 0x4 - core index']
  #allocation1 [shape = 'u32[144,128]{1,0:T(1,128)}', space=vmem, size = 0x12000, scoped, tag = 'internal scratch']
  #allocation2 [shape = 'f32[10,18,4]{2,1,0:T(8,128)}', space=vmem, size = 0x1e000, scoped, tag = 'scratch operand']
  %s0 = inlined_call_operand.vmem [shape: f32[2,16,16,4], index: 0, kind: input, shape index: {}]
  %s1 = inlined_call_operand.vmem [shape: f32[2,16,16,4], index: 1, kind: input, shape index: {}]
  %s2 = inlined_call_operand.vmem [shape: f32[2,16,16,4], index: 2, kind: input, shape index: {}]
  %s3 = inlined_call_operand.vmem [shape: f32[3,12,16], index: 3, kind: input, shape index: {}]
  %s4 = inlined_call_operand.vmem [shape: f32[1,16], index: 4, kind: input, shape index: {}]
  %s5 = inlined_call_operand.vmem [shape: f32[2,16,2,16,8], index: 5, kind: output, shape index: {}]
  %s6 = sld [smem:[#allocation0]]
  $region69: #{tpu_custom_call.1} parent=0
    _
  %s8 = ssub.s32 1, %s6
  %s9 = scalar_select 0, %s8, %s6
  loop: start=0, step=1, limit=6
  $region2: #{tpu_custom_call.1} parent=0 // loop_pre_header
    _
  $region3: #{tpu_custom_call.1} parent=0 // loop_header
    %s11 = sphi 0, %s15
    %p12 = scmp.ge.s32.totalorder %s11, 6
    %s18 = sphi 0, %s30
    %s19 = sphi 0, %s26
    %s20 = sphi 0, %s18
    %s21 = sphi 0, %s19
    %s22 = sphi 0, %s20
    %s23 = sphi 0, %s21
    %s35 = sphi 0, %s37
    %s38 = sphi 0, %s35
    %s39 = sphi 0, %s38
    %s55 = sphi 0, %s39
    %s71 = sphi 0, %s73
    %s74 = sphi 0, %s71
    %s75 = sphi 0, %s74
    %s91 = sphi 0, %s75
    %s107 = sphi 0, %s109
    %s110 = sphi 0, %s107
    %s111 = sphi 0, %s110
    %s127 = sphi 0, %s111
    %s131 = sphi 0, %s131
    %s133 = sphi 0, %s131
    %s134 = sphi 0, %s133
    %s148 = sphi 0, %s134
    %s152 = sphi 0, %s152
    %s154 = sphi 0, %s152
    %s155 = sphi 0, %s154
    %s169 = sphi 0, %s155
    %s177 = sphi 0, %s179
    %s180 = sphi 0, %s177
    %s181 = sphi 0, %s180
    %s197 = sphi 0, %s181
  $region4: #{tpu_custom_call.1} parent=0 // loop_header_branch
    %14 = sbr.rel (%p12) target = $region8
  $region5: #{tpu_custom_call.1} parent=0 // loop_body
    %s16 = ssub.s32 %s11, 1
    %s17 = ssub.s32 %s11, 2
    %s24 = sadd.s32 1, %s19
    %p25 = scmp.ge.s32.totalorder %s24, 2
    %s26 = scalar_select %p25, 0, %s24
    %s27 = sadd.s32 1, %s18
    %s28 = scalar_select %p25, %s27, %s18
    %p29 = scmp.ge.s32.totalorder %s28, 2
    %s30 = scalar_select %p29, 0, %s28
    %s31 = ssub.s32 %s18, %s30
    %s32 = ssub.s32 %s19, %s26
    %s33 = sor.u32 %s31, %s32
    %p34 = scmp.eq.s32.totalorder %s33, 0
    %s36 = sadd.s32 %s35, 1
    %s37 = scalar_select %p34, %s35, %s36
    %p40 = pneg %p34
    %p41 = scmp.eq.s32.totalorder %s11, 3
    %p42 = por %p40, %p41
    %p43 = scmp.ne.s32.totalorder %s35, %s38
    %p44 = scmp.eq.s32.totalorder %s11, 0
    %p45 = por %p43, %p44
    %p46 = scmp.ne.s32.totalorder %s35, %s38
    %p47 = scmp.eq.s32.totalorder %s16, 3
    %p48 = por %p46, %p47
    %p49 = scmp.ne.s32.totalorder %s38, %s39
    %p50 = scmp.eq.s32.totalorder %s16, 0
    %p51 = por %p49, %p50
    %p52 = scmp.ne.s32.totalorder %s38, %s39
    %p53 = scmp.eq.s32.totalorder %s17, 3
    %p54 = por %p52, %p53
    %p56 = scmp.ne.s32.totalorder %s39, %s55
    %p57 = scmp.eq.s32.totalorder %s17, 0
    %p58 = por %p56, %p57
    %s59 = smul.u32 %s19, 8
    %s60 = ssub.s32 %s59, 1
    %p61 = scmp.gt.s32.totalorder %s60, 0
    %s62 = scalar_select %p61, %s60, 0
    %s63 = smul.u32 %s26, 8
    %s64 = ssub.s32 %s63, 1
    %p65 = scmp.gt.s32.totalorder %s64, 0
    %s66 = scalar_select %p65, %s64, 0
    %s67 = ssub.s32 %s18, %s30
    %s68 = ssub.s32 %s62, %s66
    %s69 = sor.u32 %s67, %s68
    %p70 = scmp.eq.s32.totalorder %s69, 0
    %s72 = sadd.s32 %s71, 1
    %s73 = scalar_select %p70, %s71, %s72
    %p76 = pneg %p70
    %p77 = scmp.eq.s32.totalorder %s11, 3
    %p78 = por %p76, %p77
    %p79 = scmp.ne.s32.totalorder %s71, %s74
    %p80 = scmp.eq.s32.totalorder %s11, 0
    %p81 = por %p79, %p80
    %p82 = scmp.ne.s32.totalorder %s71, %s74
    %p83 = scmp.eq.s32.totalorder %s16, 3
    %p84 = por %p82, %p83
    %p85 = scmp.ne.s32.totalorder %s74, %s75
    %p86 = scmp.eq.s32.totalorder %s16, 0
    %p87 = por %p85, %p86
    %p88 = scmp.ne.s32.totalorder %s74, %s75
    %p89 = scmp.eq.s32.totalorder %s17, 3
    %p90 = por %p88, %p89
    %p92 = scmp.ne.s32.totalorder %s75, %s91
    %p93 = scmp.eq.s32.totalorder %s17, 0
    %p94 = por %p92, %p93
    %s95 = sadd.s32 %s19, 1
    %s96 = smul.u32 %s95, 8
    %p97 = scmp.lt.s32.totalorder %s96, 15
    %s98 = scalar_select %p97, %s96, 15
    %s99 = sadd.s32 %s26, 1
    %s100 = smul.u32 %s99, 8
    %p101 = scmp.lt.s32.totalorder %s100, 15
    %s102 = scalar_select %p101, %s100, 15
    %s103 = ssub.s32 %s18, %s30
    %s104 = ssub.s32 %s98, %s102
    %s105 = sor.u32 %s103, %s104
    %p106 = scmp.eq.s32.totalorder %s105, 0
    %s108 = sadd.s32 %s107, 1
    %s109 = scalar_select %p106, %s107, %s108
    %p112 = pneg %p106
    %p113 = scmp.eq.s32.totalorder %s11, 3
    %p114 = por %p112, %p113
    %p115 = scmp.ne.s32.totalorder %s107, %s110
    %p116 = scmp.eq.s32.totalorder %s11, 0
    %p117 = por %p115, %p116
    %p118 = scmp.ne.s32.totalorder %s107, %s110
    %p119 = scmp.eq.s32.totalorder %s16, 3
    %p120 = por %p118, %p119
    %p121 = scmp.ne.s32.totalorder %s110, %s111
    %p122 = scmp.eq.s32.totalorder %s16, 0
    %p123 = por %p121, %p122
    %p124 = scmp.ne.s32.totalorder %s110, %s111
    %p125 = scmp.eq.s32.totalorder %s17, 3
    %p126 = por %p124, %p125
    %p128 = scmp.ne.s32.totalorder %s111, %s127
    %p129 = scmp.eq.s32.totalorder %s17, 0
    %p130 = por %p128, %p129
    %s132 = sadd.s32 %s131, 1
    %p135 = scmp.eq.s32.totalorder %s11, 3
    %p136 = scmp.ne.s32.totalorder %s131, %s133
    %p137 = scmp.eq.s32.totalorder %s11, 0
    %p138 = por %p136, %p137
    %p139 = scmp.ne.s32.totalorder %s131, %s133
    %p140 = scmp.eq.s32.totalorder %s16, 3
    %p141 = por %p139, %p140
    %p142 = scmp.ne.s32.totalorder %s133, %s134
    %p143 = scmp.eq.s32.totalorder %s16, 0
    %p144 = por %p142, %p143
    %p145 = scmp.ne.s32.totalorder %s133, %s134
    %p146 = scmp.eq.s32.totalorder %s17, 3
    %p147 = por %p145, %p146
    %p149 = scmp.ne.s32.totalorder %s134, %s148
    %p150 = scmp.eq.s32.totalorder %s17, 0
    %p151 = por %p149, %p150
    %s153 = sadd.s32 %s152, 1
    %p156 = scmp.eq.s32.totalorder %s11, 3
    %p157 = scmp.ne.s32.totalorder %s152, %s154
    %p158 = scmp.eq.s32.totalorder %s11, 0
    %p159 = por %p157, %p158
    %p160 = scmp.ne.s32.totalorder %s152, %s154
    %p161 = scmp.eq.s32.totalorder %s16, 3
    %p162 = por %p160, %p161
    %p163 = scmp.ne.s32.totalorder %s154, %s155
    %p164 = scmp.eq.s32.totalorder %s16, 0
    %p165 = por %p163, %p164
    %p166 = scmp.ne.s32.totalorder %s154, %s155
    %p167 = scmp.eq.s32.totalorder %s17, 3
    %p168 = por %p166, %p167
    %p170 = scmp.ne.s32.totalorder %s155, %s169
    %p171 = scmp.eq.s32.totalorder %s17, 0
    %p172 = por %p170, %p171
    %s173 = ssub.s32 %s18, %s30
    %s174 = ssub.s32 %s19, %s26
    %s175 = sor.u32 %s173, %s174
    %p176 = scmp.eq.s32.totalorder %s175, 0
    %s178 = sadd.s32 %s177, 1
    %s179 = scalar_select %p176, %s177, %s178
    %p182 = pneg %p176
    %p183 = scmp.eq.s32.totalorder %s11, 3
    %p184 = por %p182, %p183
    %p185 = scmp.ne.s32.totalorder %s177, %s180
    %p186 = scmp.eq.s32.totalorder %s11, 0
    %p187 = por %p185, %p186
    %p188 = scmp.ne.s32.totalorder %s177, %s180
    %p189 = scmp.eq.s32.totalorder %s16, 3
    %p190 = por %p188, %p189
    %p191 = scmp.ne.s32.totalorder %s180, %s181
    %p192 = scmp.eq.s32.totalorder %s16, 0
    %p193 = por %p191, %p192
    %p194 = scmp.ne.s32.totalorder %s180, %s181
    %p195 = scmp.eq.s32.totalorder %s17, 3
    %p196 = por %p194, %p195
    %p198 = scmp.ne.s32.totalorder %s181, %s197
    %p199 = scmp.eq.s32.totalorder %s17, 0
    %p200 = por %p198, %p199
    %p201 = scmp.le.s32.totalorder 1, %s11
    %p202 = scmp.lt.s32.totalorder %s11, 5
    %p203 = pnand %p201, %p202
    %p204 = pneg %p203
    // Predicated region
    $region9: #{tpu_custom_call.1} parent=5 // pred_check
      _
    $region10: #{tpu_custom_call.1} parent=5 // pred_check_branch
      %206 = sbr.rel (%p203) target = $region12
    $region11: #{tpu_custom_call.1} parent=5 // pred_region
      %s207 = ssub.s32 %s11, 1
      // Predicated region
      $region13: #{tpu_custom_call.1} parent=11 // pred_check
        %p208 = pneg %p144
      $region14: #{tpu_custom_call.1} parent=11 // pred_check_branch
        %210 = sbr.rel (%p208) target = $region16
      $region15: #{tpu_custom_call.1} parent=11 // pred_region
        _
      $region16: #{tpu_custom_call.1} parent=11 // pred_fallthru
        _
      // Predicated region
      $region17: #{tpu_custom_call.1} parent=11 // pred_check
        %p211 = pneg %p165
      $region18: #{tpu_custom_call.1} parent=11 // pred_check_branch
        %213 = sbr.rel (%p211) target = $region20
      $region19: #{tpu_custom_call.1} parent=11 // pred_region
        _
      $region20: #{tpu_custom_call.1} parent=11 // pred_fallthru
        _
    $region12: #{tpu_custom_call.1} parent=5 // pred_fallthru
      _
    %p214 = scmp.lt.s32.totalorder %s11, 4
    // Predicated region
    $region21: #{tpu_custom_call.1} parent=5 // pred_check
      %p215 = pneg %p214
    $region22: #{tpu_custom_call.1} parent=5 // pred_check_branch
      %217 = sbr.rel (%p215) target = $region24
    $region23: #{tpu_custom_call.1} parent=5 // pred_region
      // Predicated region
      $region25: #{tpu_custom_call.1} parent=23 // pred_check
        %p218 = pneg %p45
      $region26: #{tpu_custom_call.1} parent=23 // pred_check_branch
        %220 = sbr.rel (%p218) target = $region28
      $region27: #{tpu_custom_call.1} parent=23 // pred_region
        %s221 = smul.u32 8, %s19
        %p222 = scmp.lt.s32.totalorder %s18, 1
        %s223 = scalar_select %p222, %s18, 1
        %p224 = scmp.lt.s32.totalorder %s221, 15
        %s225 = scalar_select %p224, %s221, 15
        %s226 = smul.addr %s225, 2
        %s227 = smul.addr %s223, 32
        %s228 = sadd.s32 %s226, %s227
        %s229 = smul.addr %s228, 8
        %s230 = scalar_lea.vmem %s0, %s229
        %s231 = smul.u32 8, %s19
      $region28: #{tpu_custom_call.1} parent=23 // pred_fallthru
        _
      // Predicated region
      $region29: #{tpu_custom_call.1} parent=23 // pred_check
        %p232 = pneg %p81
      $region30: #{tpu_custom_call.1} parent=23 // pred_check_branch
        %234 = sbr.rel (%p232) target = $region32
      $region31: #{tpu_custom_call.1} parent=23 // pred_region
        %s235 = smul.u32 %s19, 8
        %s236 = ssub.s32 %s235, 1
        %p237 = scmp.gt.s32.totalorder %s236, 0
        %s238 = scalar_select %p237, %s236, 0
        %p239 = scmp.lt.s32.totalorder %s18, 1
        %s240 = scalar_select %p239, %s18, 1
        %p241 = scmp.lt.s32.totalorder %s238, 15
        %s242 = scalar_select %p241, %s238, 15
        %s243 = smul.addr %s242, 2
        %s244 = smul.addr %s240, 32
        %s245 = sadd.s32 %s243, %s244
        %s246 = smul.addr %s245, 8
        %s247 = scalar_lea.vmem %s1, %s246
        %s248 = smul.u32 %s19, 8
        %s249 = ssub.s32 %s248, 1
        %p250 = scmp.gt.s32.totalorder %s249, 0
        %s251 = scalar_select %p250, %s249, 0
      $region32: #{tpu_custom_call.1} parent=23 // pred_fallthru
        _
      // Predicated region
      $region33: #{tpu_custom_call.1} parent=23 // pred_check
        %p252 = pneg %p117
      $region34: #{tpu_custom_call.1} parent=23 // pred_check_branch
        %254 = sbr.rel (%p252) target = $region36
      $region35: #{tpu_custom_call.1} parent=23 // pred_region
        %s255 = sadd.s32 %s19, 1
        %s256 = smul.u32 %s255, 8
        %p257 = scmp.lt.s32.totalorder %s256, 15
        %s258 = scalar_select %p257, %s256, 15
        %p259 = scmp.lt.s32.totalorder %s18, 1
        %s260 = scalar_select %p259, %s18, 1
        %p261 = scmp.lt.s32.totalorder %s258, 15
        %s262 = scalar_select %p261, %s258, 15
        %s263 = smul.addr %s262, 2
        %s264 = smul.addr %s260, 32
        %s265 = sadd.s32 %s263, %s264
        %s266 = smul.addr %s265, 8
        %s267 = scalar_lea.vmem %s2, %s266
        %s268 = sadd.s32 %s19, 1
        %s269 = smul.u32 %s268, 8
        %p270 = scmp.lt.s32.totalorder %s269, 15
        %s271 = scalar_select %p270, %s269, 15
      $region36: #{tpu_custom_call.1} parent=23 // pred_fallthru
        _
    $region24: #{tpu_custom_call.1} parent=5 // pred_fallthru
      _
    %p272 = scmp.le.s32.totalorder 1, %s11
    %p273 = scmp.lt.s32.totalorder %s11, 5
    %p274 = pnand %p272, %p273
    %p275 = pneg %p274
    // Predicated region
    $region37: #{tpu_custom_call.1} parent=5 // pred_check
      _
    $region38: #{tpu_custom_call.1} parent=5 // pred_check_branch
      %277 = sbr.rel (%p274) target = $region40
    $region39: #{tpu_custom_call.1} parent=5 // pred_region
      %s278 = ssub.s32 %s11, 1
      %s279 = smul.u32 8, %s21
      %p280 = scmp.lt.s32.totalorder %s20, 1
      %s281 = scalar_select %p280, %s20, 1
      %p282 = scmp.lt.s32.totalorder %s279, 15
      %s283 = scalar_select %p282, %s279, 15
      %s284 = smul.addr %s283, 2
      %s285 = smul.addr %s281, 32
      %s286 = sadd.s32 %s284, %s285
      %s287 = smul.addr %s286, 8
      %s288 = scalar_lea.vmem %s0, %s287
      %p289 = pneg %p51
      %p290 = pneg %p48
      %s291 = smul.u32 %s21, 8
      %s292 = ssub.s32 %s291, 1
      %p293 = scmp.gt.s32.totalorder %s292, 0
      %s294 = scalar_select %p293, %s292, 0
      %p295 = scmp.lt.s32.totalorder %s20, 1
      %s296 = scalar_select %p295, %s20, 1
      %p297 = scmp.lt.s32.totalorder %s294, 15
      %s298 = scalar_select %p297, %s294, 15
      %s299 = smul.addr %s298, 2
      %s300 = smul.addr %s296, 32
      %s301 = sadd.s32 %s299, %s300
      %s302 = smul.addr %s301, 8
      %s303 = scalar_lea.vmem %s1, %s302
      %p304 = pneg %p87
      %p305 = pneg %p84
      %s306 = sadd.s32 %s21, 1
      %s307 = smul.u32 %s306, 8
      %p308 = scmp.lt.s32.totalorder %s307, 15
      %s309 = scalar_select %p308, %s307, 15
      %p310 = scmp.lt.s32.totalorder %s20, 1
      %s311 = scalar_select %p310, %s20, 1
      %p312 = scmp.lt.s32.totalorder %s309, 15
      %s313 = scalar_select %p312, %s309, 15
      %s314 = smul.addr %s313, 2
      %s315 = smul.addr %s311, 32
      %s316 = sadd.s32 %s314, %s315
      %s317 = smul.addr %s316, 8
      %s318 = scalar_lea.vmem %s2, %s317
      %p319 = pneg %p123
      %p320 = pneg %p120
      %p321 = pneg %p144
      %p322 = pneg %p141
      %p323 = pneg %p165
      %p324 = pneg %p162
      %p325 = pneg %p193
      %p326 = pneg %p190
      %s327 = smul.u32 8, %s21
      %p328 = scmp.lt.s32.totalorder %s20, 1
      %s329 = scalar_select %p328, %s20, 1
      %p330 = scmp.lt.s32.totalorder %s327, 15
      %s331 = scalar_select %p330, %s327, 15
      %s332 = smul.addr %s331, 4
      %s333 = smul.addr %s329, 64
      %s334 = sadd.s32 %s332, %s333
      %s335 = smul.addr %s334, 8
      %s336 = scalar_lea.vmem %s5, %s335
      %s337 = smul.u32 8, %s21
      %p338 = scmp.lt.s32.totalorder %s20, 1
      %s339 = scalar_select %p338, %s20, 1
      %p340 = scmp.lt.s32.totalorder %s337, 15
      %s341 = scalar_select %p340, %s337, 15
      %s342 = smul.addr %s341, 2
      %s343 = smul.addr %s339, 32
      %s344 = sadd.s32 %s342, %s343
      %s345 = smul.addr %s344, 8
      %s346 = scalar_lea.vmem %s0, %s345
      %s347 = smul.u32 8, %s21
      %s348 = smul.u32 %s21, 8
      %s349 = ssub.s32 %s348, 1
      %p350 = scmp.gt.s32.totalorder %s349, 0
      %s351 = scalar_select %p350, %s349, 0
      %p352 = scmp.lt.s32.totalorder %s20, 1
      %s353 = scalar_select %p352, %s20, 1
      %p354 = scmp.lt.s32.totalorder %s351, 15
      %s355 = scalar_select %p354, %s351, 15
      %s356 = smul.addr %s355, 2
      %s357 = smul.addr %s353, 32
      %s358 = sadd.s32 %s356, %s357
      %s359 = smul.addr %s358, 8
      %s360 = scalar_lea.vmem %s1, %s359
      %s361 = smul.u32 %s21, 8
      %s362 = ssub.s32 %s361, 1
      %p363 = scmp.gt.s32.totalorder %s362, 0
      %s364 = scalar_select %p363, %s362, 0
      %s365 = sadd.s32 %s21, 1
      %s366 = smul.u32 %s365, 8
      %p367 = scmp.lt.s32.totalorder %s366, 15
      %s368 = scalar_select %p367, %s366, 15
      %p369 = scmp.lt.s32.totalorder %s20, 1
      %s370 = scalar_select %p369, %s20, 1
      %p371 = scmp.lt.s32.totalorder %s368, 15
      %s372 = scalar_select %p371, %s368, 15
      %s373 = smul.addr %s372, 2
      %s374 = smul.addr %s370, 32
      %s375 = sadd.s32 %s373, %s374
      %s376 = smul.addr %s375, 8
      %s377 = scalar_lea.vmem %s2, %s376
      %s378 = sadd.s32 %s21, 1
      %s379 = smul.u32 %s378, 8
      %p380 = scmp.lt.s32.totalorder %s379, 15
      %s381 = scalar_select %p380, %s379, 15
      %s382 = smul.u32 8, %s21
      %p383 = scmp.lt.s32.totalorder %s20, 1
      %s384 = scalar_select %p383, %s20, 1
      %p385 = scmp.lt.s32.totalorder %s382, 15
      %s386 = scalar_select %p385, %s382, 15
      %s387 = smul.addr %s386, 4
      %s388 = smul.addr %s384, 64
      %s389 = sadd.s32 %s387, %s388
      %s390 = smul.addr %s389, 8
      %s391 = scalar_lea.vmem %s5, %s390
      %s392 = smul.u32 8, %s21
      %v393 = vld [vmem:[%s346] sm:$0xff]
      %v394 = vld [vmem:[%s346 + $0x8] sm:$0xff]
      %v395 = vld [vmem:[%s346 + $0x10] sm:$0xff]
      %v396 = vld [vmem:[%s346 + $0x18] sm:$0xff]
      %v397 = vld [vmem:[%s346 + $0x20] sm:$0xff]
      %v398 = vld [vmem:[%s346 + $0x28] sm:$0xff]
      %v399 = vld [vmem:[%s346 + $0x30] sm:$0xff]
      %v400 = vld [vmem:[%s346 + $0x38] sm:$0xff]
      %v401 = vld [vmem:[%s346 + $0x40] sm:$0xff]
      %v402 = vld [vmem:[%s346 + $0x48] sm:$0xff]
      %v403 = vld [vmem:[%s346 + $0x50] sm:$0xff]
      %v404 = vld [vmem:[%s346 + $0x58] sm:$0xff]
      %v405 = vld [vmem:[%s346 + $0x60] sm:$0xff]
      %v406 = vld [vmem:[%s346 + $0x68] sm:$0xff]
      %v407 = vld [vmem:[%s346 + $0x70] sm:$0xff]
      %v408 = vld [vmem:[%s346 + $0x78] sm:$0xff]
      %s409 = scalar_lea.vmem [#allocation2], 24
      %vm410 = vcmask 31744
      %411 = vst.msk [vmem:[%s409 + $0x1] sm:$0xff] %vm410, %v393
      %412 = vst.msk [vmem:[%s409 + $0x9] sm:$0xff] %vm410, %v394
      %413 = vst.msk [vmem:[%s409 + $0x19] sm:$0xff] %vm410, %v395
      %414 = vst.msk [vmem:[%s409 + $0x21] sm:$0xff] %vm410, %v396
      %415 = vst.msk [vmem:[%s409 + $0x31] sm:$0xff] %vm410, %v397
      %416 = vst.msk [vmem:[%s409 + $0x39] sm:$0xff] %vm410, %v398
      %417 = vst.msk [vmem:[%s409 + $0x49] sm:$0xff] %vm410, %v399
      %418 = vst.msk [vmem:[%s409 + $0x51] sm:$0xff] %vm410, %v400
      %419 = vst.msk [vmem:[%s409 + $0x61] sm:$0xff] %vm410, %v401
      %420 = vst.msk [vmem:[%s409 + $0x69] sm:$0xff] %vm410, %v402
      %421 = vst.msk [vmem:[%s409 + $0x79] sm:$0xff] %vm410, %v403
      %422 = vst.msk [vmem:[%s409 + $0x81] sm:$0xff] %vm410, %v404
      %423 = vst.msk [vmem:[%s409 + $0x91] sm:$0xff] %vm410, %v405
      %424 = vst.msk [vmem:[%s409 + $0x99] sm:$0xff] %vm410, %v406
      %425 = vst.msk [vmem:[%s409 + $0xa9] sm:$0xff] %vm410, %v407
      %426 = vst.msk [vmem:[%s409 + $0xb1] sm:$0xff] %vm410, %v408
      %vm427 = vcmask 24576
      %428 = vst.msk [vmem:[#allocation2] sm:$0x1] %vm427, 0.0
      %429 = vst.msk [vmem:[#allocation2 + $0x18] sm:$0x1] %vm427, 0.0
      %430 = vst.msk [vmem:[#allocation2 + $0x30] sm:$0x1] %vm427, 0.0
      %431 = vst.msk [vmem:[#allocation2 + $0x48] sm:$0x1] %vm427, 0.0
      %432 = vst.msk [vmem:[#allocation2 + $0x60] sm:$0x1] %vm427, 0.0
      %433 = vst.msk [vmem:[#allocation2 + $0x78] sm:$0x1] %vm427, 0.0
      %434 = vst.msk [vmem:[#allocation2 + $0x90] sm:$0x1] %vm427, 0.0
      %435 = vst.msk [vmem:[#allocation2 + $0xa8] sm:$0x1] %vm427, 0.0
      %436 = vst.msk [vmem:[#allocation2 + $0xc0] sm:$0x1] %vm427, 0.0
      %437 = vst.msk [vmem:[#allocation2 + $0xd8] sm:$0x1] %vm427, 0.0
      %438 = vst.msk [vmem:[#allocation2 + $0x11] sm:$0x1] %vm427, 0.0
      %439 = vst.msk [vmem:[#allocation2 + $0x29] sm:$0x1] %vm427, 0.0
      %440 = vst.msk [vmem:[#allocation2 + $0x41] sm:$0x1] %vm427, 0.0
      %441 = vst.msk [vmem:[#allocation2 + $0x59] sm:$0x1] %vm427, 0.0
      %442 = vst.msk [vmem:[#allocation2 + $0x71] sm:$0x1] %vm427, 0.0
      %443 = vst.msk [vmem:[#allocation2 + $0x89] sm:$0x1] %vm427, 0.0
      %444 = vst.msk [vmem:[#allocation2 + $0xa1] sm:$0x1] %vm427, 0.0
      %445 = vst.msk [vmem:[#allocation2 + $0xb9] sm:$0x1] %vm427, 0.0
      %446 = vst.msk [vmem:[#allocation2 + $0xd1] sm:$0x1] %vm427, 0.0
      %447 = vst.msk [vmem:[#allocation2 + $0xe9] sm:$0x1] %vm427, 0.0
      %p448 = scmp.gt.s32.totalorder %s21, 0
      // Predicated region
      $region41: #{tpu_custom_call.1} parent=39 // pred_check
        %p449 = pneg %p448
      $region42: #{tpu_custom_call.1} parent=39 // pred_check_branch
        %451 = sbr.rel (%p449) target = $region44
      $region43: #{tpu_custom_call.1} parent=39 // pred_region
        %v452 = vld [vmem:[%s360] sm:$0xff]
        %v453 = vld [vmem:[%s360 + $0x8] sm:$0xff]
        %454 = vst.msk [vmem:[#allocation2 + $0x1] sm:$0xff] %vm410, %v452
        %455 = vst.msk [vmem:[#allocation2 + $0x9] sm:$0xff] %vm410, %v453
      $region44: #{tpu_custom_call.1} parent=39 // pred_fallthru
        _
      %p456 = scmp.eq.s32.totalorder %s21, 0
      // Predicated region
      $region45: #{tpu_custom_call.1} parent=39 // pred_check
        %p457 = pneg %p456
      $region46: #{tpu_custom_call.1} parent=39 // pred_check_branch
        %459 = sbr.rel (%p457) target = $region48
      $region47: #{tpu_custom_call.1} parent=39 // pred_region
        %460 = vst.msk [vmem:[#allocation2 + $0x1] sm:$0xff] %vm410, 0.0
        %461 = vst.msk [vmem:[#allocation2 + $0x9] sm:$0xff] %vm410, 0.0
      $region48: #{tpu_custom_call.1} parent=39 // pred_fallthru
        _
      %p462 = scmp.lt.s32.totalorder %s21, 1
      // Predicated region
      $region49: #{tpu_custom_call.1} parent=39 // pred_check
        %p463 = pneg %p462
      $region50: #{tpu_custom_call.1} parent=39 // pred_check_branch
        %465 = sbr.rel (%p463) target = $region52
      $region51: #{tpu_custom_call.1} parent=39 // pred_region
        %v466 = vld [vmem:[%s377] sm:$0xff]
        %v467 = vld [vmem:[%s377 + $0x8] sm:$0xff]
        %s468 = scalar_lea.vmem [#allocation2], 216
        %469 = vst.msk [vmem:[%s468 + $0x1] sm:$0xff] %vm410, %v466
        %470 = vst.msk [vmem:[%s468 + $0x9] sm:$0xff] %vm410, %v467
      $region52: #{tpu_custom_call.1} parent=39 // pred_fallthru
        _
      %p471 = scmp.eq.s32.totalorder %s21, 1
      // Predicated region
      $region53: #{tpu_custom_call.1} parent=39 // pred_check
        %p472 = pneg %p471
      $region54: #{tpu_custom_call.1} parent=39 // pred_check_branch
        %474 = sbr.rel (%p472) target = $region56
      $region55: #{tpu_custom_call.1} parent=39 // pred_region
        %s475 = scalar_lea.vmem [#allocation2], 216
        %476 = vst.msk [vmem:[%s475 + $0x1] sm:$0xff] %vm410, 0.0
        %477 = vst.msk [vmem:[%s475 + $0x9] sm:$0xff] %vm410, 0.0
      $region56: #{tpu_custom_call.1} parent=39 // pred_fallthru
        _
      %v478 = vld [vmem:[#allocation2] sm:$0xff]
      %v479 = vld [vmem:[#allocation2 + $0x8] sm:$0xff]
      %v480 = vld [vmem:[#allocation2 + $0x18] sm:$0xff]
      %v481 = vld [vmem:[#allocation2 + $0x20] sm:$0xff]
      %v482 = vld [vmem:[#allocation2 + $0x30] sm:$0xff]
      %v483 = vld [vmem:[#allocation2 + $0x38] sm:$0xff]
      %v484 = vld [vmem:[#allocation2 + $0x48] sm:$0xff]
      %v485 = vld [vmem:[#allocation2 + $0x50] sm:$0xff]
      %v486 = vld [vmem:[#allocation2 + $0x60] sm:$0xff]
      %v487 = vld [vmem:[#allocation2 + $0x68] sm:$0xff]
      %v488 = vld [vmem:[#allocation2 + $0x78] sm:$0xff]
      %v489 = vld [vmem:[#allocation2 + $0x80] sm:$0xff]
      %v490 = vld [vmem:[#allocation2 + $0x90] sm:$0xff]
      %v491 = vld [vmem:[#allocation2 + $0x98] sm:$0xff]
      %v492 = vld [vmem:[#allocation2 + $0xa8] sm:$0xff]
      %v493 = vld [vmem:[#allocation2 + $0xb0] sm:$0xff]
      %v494 = vld [vmem:[#allocation2 + $0x1] sm:$0xff]
      %v495 = vld [vmem:[#allocation2 + $0x9] sm:$0xff]
      %v496 = vld [vmem:[#allocation2 + $0x19] sm:$0xff]
      %v497 = vld [vmem:[#allocation2 + $0x21] sm:$0xff]
      %v498 = vld [vmem:[#allocation2 + $0x31] sm:$0xff]
      %v499 = vld [vmem:[#allocation2 + $0x39] sm:$0xff]
      %v500 = vld [vmem:[#allocation2 + $0x49] sm:$0xff]
      %v501 = vld [vmem:[#allocation2 + $0x51] sm:$0xff]
      %v502 = vld [vmem:[#allocation2 + $0x61] sm:$0xff]
      %v503 = vld [vmem:[#allocation2 + $0x69] sm:$0xff]
      %v504 = vld [vmem:[#allocation2 + $0x79] sm:$0xff]
      %v505 = vld [vmem:[#allocation2 + $0x81] sm:$0xff]
      %v506 = vld [vmem:[#allocation2 + $0x91] sm:$0xff]
      %v507 = vld [vmem:[#allocation2 + $0x99] sm:$0xff]
      %v508 = vld [vmem:[#allocation2 + $0xa9] sm:$0xff]
      %v509 = vld [vmem:[#allocation2 + $0xb1] sm:$0xff]
      %v510 = vld [vmem:[#allocation2 + $0x2] sm:$0xff]
      %v511 = vld [vmem:[#allocation2 + $0xa] sm:$0xff]
      %v512 = vld [vmem:[#allocation2 + $0x1a] sm:$0xff]
      %v513 = vld [vmem:[#allocation2 + $0x22] sm:$0xff]
      %v514 = vld [vmem:[#allocation2 + $0x32] sm:$0xff]
      %v515 = vld [vmem:[#allocation2 + $0x3a] sm:$0xff]
      %v516 = vld [vmem:[#allocation2 + $0x4a] sm:$0xff]
      %v517 = vld [vmem:[#allocation2 + $0x52] sm:$0xff]
      %v518 = vld [vmem:[#allocation2 + $0x62] sm:$0xff]
      %v519 = vld [vmem:[#allocation2 + $0x6a] sm:$0xff]
      %v520 = vld [vmem:[#allocation2 + $0x7a] sm:$0xff]
      %v521 = vld [vmem:[#allocation2 + $0x82] sm:$0xff]
      %v522 = vld [vmem:[#allocation2 + $0x92] sm:$0xff]
      %v523 = vld [vmem:[#allocation2 + $0x9a] sm:$0xff]
      %v524 = vld [vmem:[#allocation2 + $0xaa] sm:$0xff]
      %v525 = vld [vmem:[#allocation2 + $0xb2] sm:$0xff]
      %542 = vrot.lane.b32.xlu0 %v494, 4
      %v543 = vpop.permute.xlu0 %542
      %544 = vrot.lane.b32.xlu0 %v495, 4
      %v545 = vpop.permute.xlu0 %544
      %546 = vrot.lane.b32.xlu0 %v496, 4
      %v547 = vpop.permute.xlu0 %546
      %548 = vrot.lane.b32.xlu0 %v497, 4
      %v549 = vpop.permute.xlu0 %548
      %550 = vrot.lane.b32.xlu0 %v498, 4
      %v551 = vpop.permute.xlu0 %550
      %552 = vrot.lane.b32.xlu0 %v499, 4
      %v553 = vpop.permute.xlu0 %552
      %554 = vrot.lane.b32.xlu0 %v500, 4
      %v555 = vpop.permute.xlu0 %554
      %556 = vrot.lane.b32.xlu0 %v501, 4
      %v557 = vpop.permute.xlu0 %556
      %558 = vrot.lane.b32.xlu0 %v502, 4
      %v559 = vpop.permute.xlu0 %558
      %560 = vrot.lane.b32.xlu0 %v503, 4
      %v561 = vpop.permute.xlu0 %560
      %562 = vrot.lane.b32.xlu0 %v504, 4
      %v563 = vpop.permute.xlu0 %562
      %564 = vrot.lane.b32.xlu0 %v505, 4
      %v565 = vpop.permute.xlu0 %564
      %566 = vrot.lane.b32.xlu0 %v506, 4
      %v567 = vpop.permute.xlu0 %566
      %568 = vrot.lane.b32.xlu0 %v507, 4
      %v569 = vpop.permute.xlu0 %568
      %570 = vrot.lane.b32.xlu0 %v508, 4
      %v571 = vpop.permute.xlu0 %570
      %572 = vrot.lane.b32.xlu0 %v509, 4
      %v573 = vpop.permute.xlu0 %572
      %606 = vrot.lane.b32.xlu0 %v510, 8
      %v607 = vpop.permute.xlu0 %606
      %608 = vrot.lane.b32.xlu0 %v511, 8
      %v609 = vpop.permute.xlu0 %608
      %610 = vrot.lane.b32.xlu0 %v512, 8
      %v611 = vpop.permute.xlu0 %610
      %612 = vrot.lane.b32.xlu0 %v513, 8
      %v613 = vpop.permute.xlu0 %612
      %614 = vrot.lane.b32.xlu0 %v514, 8
      %v615 = vpop.permute.xlu0 %614
      %616 = vrot.lane.b32.xlu0 %v515, 8
      %v617 = vpop.permute.xlu0 %616
      %618 = vrot.lane.b32.xlu0 %v516, 8
      %v619 = vpop.permute.xlu0 %618
      %620 = vrot.lane.b32.xlu0 %v517, 8
      %v621 = vpop.permute.xlu0 %620
      %622 = vrot.lane.b32.xlu0 %v518, 8
      %v623 = vpop.permute.xlu0 %622
      %624 = vrot.lane.b32.xlu0 %v519, 8
      %v625 = vpop.permute.xlu0 %624
      %626 = vrot.lane.b32.xlu0 %v520, 8
      %v627 = vpop.permute.xlu0 %626
      %628 = vrot.lane.b32.xlu0 %v521, 8
      %v629 = vpop.permute.xlu0 %628
      %630 = vrot.lane.b32.xlu0 %v522, 8
      %v631 = vpop.permute.xlu0 %630
      %632 = vrot.lane.b32.xlu0 %v523, 8
      %v633 = vpop.permute.xlu0 %632
      %634 = vrot.lane.b32.xlu0 %v524, 8
      %v635 = vpop.permute.xlu0 %634
      %636 = vrot.lane.b32.xlu0 %v525, 8
      %v637 = vpop.permute.xlu0 %636
      %v654 = vsel %vm410, %v478, %v543
      %v655 = vsel %vm410, %v479, %v545
      %v656 = vsel %vm410, %v480, %v547
      %v657 = vsel %vm410, %v481, %v549
      %v658 = vsel %vm410, %v482, %v551
      %v659 = vsel %vm410, %v483, %v553
      %v660 = vsel %vm410, %v484, %v555
      %v661 = vsel %vm410, %v485, %v557
      %v662 = vsel %vm410, %v486, %v559
      %v663 = vsel %vm410, %v487, %v561
      %v664 = vsel %vm410, %v488, %v563
      %v665 = vsel %vm410, %v489, %v565
      %v666 = vsel %vm410, %v490, %v567
      %v667 = vsel %vm410, %v491, %v569
      %v668 = vsel %vm410, %v492, %v571
      %v669 = vsel %vm410, %v493, %v573
      %vm670 = vcmask 64512
      %v671 = vsel %vm670, %v654, %v607
      %v672 = vsel %vm670, %v655, %v609
      %v673 = vsel %vm670, %v656, %v611
      %v674 = vsel %vm670, %v657, %v613
      %v675 = vsel %vm670, %v658, %v615
      %v676 = vsel %vm670, %v659, %v617
      %v677 = vsel %vm670, %v660, %v619
      %v678 = vsel %vm670, %v661, %v621
      %v679 = vsel %vm670, %v662, %v623
      %v680 = vsel %vm670, %v663, %v625
      %v681 = vsel %vm670, %v664, %v627
      %v682 = vsel %vm670, %v665, %v629
      %v683 = vsel %vm670, %v666, %v631
      %v684 = vsel %vm670, %v667, %v633
      %v685 = vsel %vm670, %v668, %v635
      %v686 = vsel %vm670, %v669, %v637
      %v687 = vld [vmem:[%s3] sm:$0xff]
      %v688 = vld [vmem:[%s3 + $0x8] sm:$0xf]
      %v689 = vld [vmem:[%s409] sm:$0xff]
      %v690 = vld [vmem:[%s409 + $0x8] sm:$0xff]
      %v691 = vld [vmem:[%s409 + $0x18] sm:$0xff]
      %v692 = vld [vmem:[%s409 + $0x20] sm:$0xff]
      %v693 = vld [vmem:[%s409 + $0x30] sm:$0xff]
      %v694 = vld [vmem:[%s409 + $0x38] sm:$0xff]
      %v695 = vld [vmem:[%s409 + $0x48] sm:$0xff]
      %v696 = vld [vmem:[%s409 + $0x50] sm:$0xff]
      %v697 = vld [vmem:[%s409 + $0x60] sm:$0xff]
      %v698 = vld [vmem:[%s409 + $0x68] sm:$0xff]
      %v699 = vld [vmem:[%s409 + $0x78] sm:$0xff]
      %v700 = vld [vmem:[%s409 + $0x80] sm:$0xff]
      %v701 = vld [vmem:[%s409 + $0x90] sm:$0xff]
      %v702 = vld [vmem:[%s409 + $0x98] sm:$0xff]
      %v703 = vld [vmem:[%s409 + $0xa8] sm:$0xff]
      %v704 = vld [vmem:[%s409 + $0xb0] sm:$0xff]
      %v705 = vld [vmem:[%s409 + $0x1] sm:$0xff]
      %v706 = vld [vmem:[%s409 + $0x9] sm:$0xff]
      %v707 = vld [vmem:[%s409 + $0x19] sm:$0xff]
      %v708 = vld [vmem:[%s409 + $0x21] sm:$0xff]
      %v709 = vld [vmem:[%s409 + $0x31] sm:$0xff]
      %v710 = vld [vmem:[%s409 + $0x39] sm:$0xff]
      %v711 = vld [vmem:[%s409 + $0x49] sm:$0xff]
      %v712 = vld [vmem:[%s409 + $0x51] sm:$0xff]
      %v713 = vld [vmem:[%s409 + $0x61] sm:$0xff]
      %v714 = vld [vmem:[%s409 + $0x69] sm:$0xff]
      %v715 = vld [vmem:[%s409 + $0x79] sm:$0xff]
      %v716 = vld [vmem:[%s409 + $0x81] sm:$0xff]
      %v717 = vld [vmem:[%s409 + $0x91] sm:$0xff]
      %v718 = vld [vmem:[%s409 + $0x99] sm:$0xff]
      %v719 = vld [vmem:[%s409 + $0xa9] sm:$0xff]
      %v720 = vld [vmem:[%s409 + $0xb1] sm:$0xff]
      %v721 = vld [vmem:[%s409 + $0x2] sm:$0xff]
      %v722 = vld [vmem:[%s409 + $0xa] sm:$0xff]
      %v723 = vld [vmem:[%s409 + $0x1a] sm:$0xff]
      %v724 = vld [vmem:[%s409 + $0x22] sm:$0xff]
      %v725 = vld [vmem:[%s409 + $0x32] sm:$0xff]
      %v726 = vld [vmem:[%s409 + $0x3a] sm:$0xff]
      %v727 = vld [vmem:[%s409 + $0x4a] sm:$0xff]
      %v728 = vld [vmem:[%s409 + $0x52] sm:$0xff]
      %v729 = vld [vmem:[%s409 + $0x62] sm:$0xff]
      %v730 = vld [vmem:[%s409 + $0x6a] sm:$0xff]
      %v731 = vld [vmem:[%s409 + $0x7a] sm:$0xff]
      %v732 = vld [vmem:[%s409 + $0x82] sm:$0xff]
      %v733 = vld [vmem:[%s409 + $0x92] sm:$0xff]
      %v734 = vld [vmem:[%s409 + $0x9a] sm:$0xff]
      %v735 = vld [vmem:[%s409 + $0xaa] sm:$0xff]
      %v736 = vld [vmem:[%s409 + $0xb2] sm:$0xff]
      %753 = vrot.lane.b32.xlu0 %v705, 4
      %v754 = vpop.permute.xlu0 %753
      %755 = vrot.lane.b32.xlu0 %v706, 4
      %v756 = vpop.permute.xlu0 %755
      %757 = vrot.lane.b32.xlu0 %v707, 4
      %v758 = vpop.permute.xlu0 %757
      %759 = vrot.lane.b32.xlu0 %v708, 4
      %v760 = vpop.permute.xlu0 %759
      %761 = vrot.lane.b32.xlu0 %v709, 4
      %v762 = vpop.permute.xlu0 %761
      %763 = vrot.lane.b32.xlu0 %v710, 4
      %v764 = vpop.permute.xlu0 %763
      %765 = vrot.lane.b32.xlu0 %v711, 4
      %v766 = vpop.permute.xlu0 %765
      %767 = vrot.lane.b32.xlu0 %v712, 4
      %v768 = vpop.permute.xlu0 %767
      %769 = vrot.lane.b32.xlu0 %v713, 4
      %v770 = vpop.permute.xlu0 %769
      %771 = vrot.lane.b32.xlu0 %v714, 4
      %v772 = vpop.permute.xlu0 %771
      %773 = vrot.lane.b32.xlu0 %v715, 4
      %v774 = vpop.permute.xlu0 %773
      %775 = vrot.lane.b32.xlu0 %v716, 4
      %v776 = vpop.permute.xlu0 %775
      %777 = vrot.lane.b32.xlu0 %v717, 4
      %v778 = vpop.permute.xlu0 %777
      %779 = vrot.lane.b32.xlu0 %v718, 4
      %v780 = vpop.permute.xlu0 %779
      %781 = vrot.lane.b32.xlu0 %v719, 4
      %v782 = vpop.permute.xlu0 %781
      %783 = vrot.lane.b32.xlu0 %v720, 4
      %v784 = vpop.permute.xlu0 %783
      %817 = vrot.lane.b32.xlu0 %v721, 8
      %v818 = vpop.permute.xlu0 %817
      %819 = vrot.lane.b32.xlu0 %v722, 8
      %v820 = vpop.permute.xlu0 %819
      %821 = vrot.lane.b32.xlu0 %v723, 8
      %v822 = vpop.permute.xlu0 %821
      %823 = vrot.lane.b32.xlu0 %v724, 8
      %v824 = vpop.permute.xlu0 %823
      %825 = vrot.lane.b32.xlu0 %v725, 8
      %v826 = vpop.permute.xlu0 %825
      %827 = vrot.lane.b32.xlu0 %v726, 8
      %v828 = vpop.permute.xlu0 %827
      %829 = vrot.lane.b32.xlu0 %v727, 8
      %v830 = vpop.permute.xlu0 %829
      %831 = vrot.lane.b32.xlu0 %v728, 8
      %v832 = vpop.permute.xlu0 %831
      %833 = vrot.lane.b32.xlu0 %v729, 8
      %v834 = vpop.permute.xlu0 %833
      %835 = vrot.lane.b32.xlu0 %v730, 8
      %v836 = vpop.permute.xlu0 %835
      %837 = vrot.lane.b32.xlu0 %v731, 8
      %v838 = vpop.permute.xlu0 %837
      %839 = vrot.lane.b32.xlu0 %v732, 8
      %v840 = vpop.permute.xlu0 %839
      %841 = vrot.lane.b32.xlu0 %v733, 8
      %v842 = vpop.permute.xlu0 %841
      %843 = vrot.lane.b32.xlu0 %v734, 8
      %v844 = vpop.permute.xlu0 %843
      %845 = vrot.lane.b32.xlu0 %v735, 8
      %v846 = vpop.permute.xlu0 %845
      %847 = vrot.lane.b32.xlu0 %v736, 8
      %v848 = vpop.permute.xlu0 %847
      %v865 = vsel %vm410, %v689, %v754
      %v866 = vsel %vm410, %v690, %v756
      %v867 = vsel %vm410, %v691, %v758
      %v868 = vsel %vm410, %v692, %v760
      %v869 = vsel %vm410, %v693, %v762
      %v870 = vsel %vm410, %v694, %v764
      %v871 = vsel %vm410, %v695, %v766
      %v872 = vsel %vm410, %v696, %v768
      %v873 = vsel %vm410, %v697, %v770
      %v874 = vsel %vm410, %v698, %v772
      %v875 = vsel %vm410, %v699, %v774
      %v876 = vsel %vm410, %v700, %v776
      %v877 = vsel %vm410, %v701, %v778
      %v878 = vsel %vm410, %v702, %v780
      %v879 = vsel %vm410, %v703, %v782
      %v880 = vsel %vm410, %v704, %v784
      %v881 = vsel %vm670, %v865, %v818
      %v882 = vsel %vm670, %v866, %v820
      %v883 = vsel %vm670, %v867, %v822
      %v884 = vsel %vm670, %v868, %v824
      %v885 = vsel %vm670, %v869, %v826
      %v886 = vsel %vm670, %v870, %v828
      %v887 = vsel %vm670, %v871, %v830
      %v888 = vsel %vm670, %v872, %v832
      %v889 = vsel %vm670, %v873, %v834
      %v890 = vsel %vm670, %v874, %v836
      %v891 = vsel %vm670, %v875, %v838
      %v892 = vsel %vm670, %v876, %v840
      %v893 = vsel %vm670, %v877, %v842
      %v894 = vsel %vm670, %v878, %v844
      %v895 = vsel %vm670, %v879, %v846
      %v896 = vsel %vm670, %v880, %v848
      %s897 = scalar_lea.vmem %s3, 16
      %v898 = vld [vmem:[%s897] sm:$0xff]
      %v899 = vld [vmem:[%s897 + $0x8] sm:$0xf]
      %vm900 = vcmask 97280
      %v902 = vsel %vm900, %v881, 0
      %v905 = vsel %vm900, %v882, 0
      %v908 = vsel %vm900, %v883, 0
      %v911 = vsel %vm900, %v884, 0
      %v914 = vsel %vm900, %v885, 0
      %v917 = vsel %vm900, %v886, 0
      %v920 = vsel %vm900, %v887, 0
      %v923 = vsel %vm900, %v888, 0
      %v926 = vsel %vm900, %v889, 0
      %v929 = vsel %vm900, %v890, 0
      %v932 = vsel %vm900, %v891, 0
      %v935 = vsel %vm900, %v892, 0
      %v938 = vsel %vm900, %v893, 0
      %v941 = vsel %vm900, %v894, 0
      %v944 = vsel %vm900, %v895, 0
      %v947 = vsel %vm900, %v896, 0
      %vm949 = vcmask 1043456
      %v951 = vsel %vm949, %v899, 0
      %953 = vmatprep.subr.mxu0 0.0
      %954 = vmatpush1.msra.mxu0 %v898
      %955 = vmatprep.subr.mxu0 0.0
      %956 = vmatpush1.msra.mxu0 %v951
      %957 = vmatprep.subr.mxu0 0.0
      %958 = vmatpush1.msra.mxu0 0.0
      %959 = vmatprep.subr.mxu0 0.0
      %960 = vmatpush1.msra.mxu0 0.0
      %961 = vmatprep.subr.mxu0 0.0
      %962 = vmatpush1.msra.mxu0 0.0
      %963 = vmatprep.subr.mxu0 0.0
      %964 = vmatpush1.msra.mxu0 0.0
      %965 = vmatprep.subr.mxu0 0.0
      %966 = vmatpush1.msra.mxu0 0.0
      %967 = vmatprep.subr.mxu0 0.0
      %968 = vmatpush1.msra.mxu0 0.0
      %969 = vmatprep.subr.mxu0 0.0
      %970 = vmatpush1.msra.mxu0 0.0
      %971 = vmatprep.subr.mxu0 0.0
      %972 = vmatpush1.msra.mxu0 0.0
      %973 = vmatprep.subr.mxu0 0.0
      %974 = vmatpush1.msra.mxu0 0.0
      %975 = vmatprep.subr.mxu0 0.0
      %976 = vmatpush1.msra.mxu0 0.0
      %977 = vmatprep.subr.mxu0 0.0
      %978 = vmatpush1.msra.mxu0 0.0
      %979 = vmatprep.subr.mxu0 0.0
      %980 = vmatpush1.msra.mxu0 0.0
      %981 = vmatprep.subr.mxu0 0.0
      %982 = vmatpush1.msra.mxu0 0.0
      %983 = vmatprep.subr.mxu0 0.0
      %984 = vmatpush1.msra.mxu0 0.0
      %985 = vmatprep.subr.mxu0 0.0
      %986 = vmatpush1.msra.mxu0 0.0
      %987 = vmatprep.subr.mxu0 0.0
      %988 = vmatpush1.msra.mxu0 0.0
      %989 = vmatprep.subr.mxu0 0.0
      %990 = vmatpush1.msra.mxu0 0.0
      %991 = vmatprep.subr.mxu0 0.0
      %992 = vmatpush1.msra.mxu0 0.0
      %993 = vmatprep.subr.mxu0 0.0
      %994 = vmatpush1.msra.mxu0 0.0
      %995 = vmatprep.subr.mxu0 0.0
      %996 = vmatpush1.msra.mxu0 0.0
      %997 = vmatprep.subr.mxu0 0.0
      %998 = vmatpush1.msra.mxu0 0.0
      %999 = vmatprep.subr.mxu0 0.0
      %1000 = vmatpush1.msra.mxu0 0.0
      %1001 = vmatprep.subr.mxu0 0.0
      %1002 = vmatpush1.msra.mxu0 0.0
      %1003 = vmatprep.subr.mxu0 0.0
      %1004 = vmatpush1.msra.mxu0 0.0
      %1005 = vmatprep.subr.mxu0 0.0
      %1006 = vmatpush1.msra.mxu0 0.0
      %1007 = vmatprep.subr.mxu0 0.0
      %1008 = vmatpush1.msra.mxu0 0.0
      %1009 = vmatprep.subr.mxu0 0.0
      %1010 = vmatpush1.msra.mxu0 0.0
      %1011 = vmatprep.subr.mxu0 0.0
      %1012 = vmatpush1.msra.mxu0 0.0
      %1013 = vmatprep.subr.mxu0 0.0
      %1014 = vmatpush1.msra.mxu0 0.0
      %1015 = vmatprep.subr.mxu0 0.0
      %1016 = vmatpush1.msra.mxu0 0.0
      %1017 = vmatprep.mubr.f32.mxu0 0.0
      %1018 = vmatmul.mubr.f32.gmra.mrb[0].mxu0 %v902
      %v1019 = vpop.f32.mrb[0].mxu0
      %v1020 = vadd.f32 0.0, %v1019
      %v1021 = vpop.f32.mrb[0].mxu0
      %1022 = vmatprep.mubr.f32.mxu0 0.0
      %1023 = vmatmul.mubr.f32.gmra.mrb[0].mxu0 %v905
      %v1024 = vpop.f32.mrb[0].mxu0
      %v1025 = vadd.f32 0.0, %v1024
      %v1026 = vpop.f32.mrb[0].mxu0
      %1027 = vmatprep.mubr.f32.mxu0 0.0
      %1028 = vmatmul.mubr.f32.gmra.mrb[0].mxu0 %v908
      %v1029 = vpop.f32.mrb[0].mxu0
      %v1030 = vadd.f32 0.0, %v1029
      %v1031 = vpop.f32.mrb[0].mxu0
      %1032 = vmatprep.mubr.f32.mxu0 0.0
      %1033 = vmatmul.mubr.f32.gmra.mrb[0].mxu0 %v911
      %v1034 = vpop.f32.mrb[0].mxu0
      %v1035 = vadd.f32 0.0, %v1034
      %v1036 = vpop.f32.mrb[0].mxu0
      %1037 = vmatprep.mubr.f32.mxu0 0.0
      %1038 = vmatmul.mubr.f32.gmra.mrb[0].mxu0 %v914
      %v1039 = vpop.f32.mrb[0].mxu0
      %v1040 = vadd.f32 0.0, %v1039
      %v1041 = vpop.f32.mrb[0].mxu0
      %1042 = vmatprep.mubr.f32.mxu0 0.0
      %1043 = vmatmul.mubr.f32.gmra.mrb[0].mxu0 %v917
      %v1044 = vpop.f32.mrb[0].mxu0
      %v1045 = vadd.f32 0.0, %v1044
      %v1046 = vpop.f32.mrb[0].mxu0
      %1047 = vmatprep.mubr.f32.mxu0 0.0
      %1048 = vmatmul.mubr.f32.gmra.mrb[0].mxu0 %v920
      %v1049 = vpop.f32.mrb[0].mxu0
      %v1050 = vadd.f32 0.0, %v1049
      %v1051 = vpop.f32.mrb[0].mxu0
      %1052 = vmatprep.mubr.f32.mxu0 0.0
      %1053 = vmatmul.mubr.f32.gmra.mrb[0].mxu0 %v923
      %v1054 = vpop.f32.mrb[0].mxu0
      %v1055 = vadd.f32 0.0, %v1054
      %v1056 = vpop.f32.mrb[0].mxu0
      %1057 = vmatprep.mubr.f32.mxu0 0.0
      %1058 = vmatmul.mubr.f32.gmra.mrb[0].mxu0 %v926
      %v1059 = vpop.f32.mrb[0].mxu0
      %v1060 = vadd.f32 0.0, %v1059
      %v1061 = vpop.f32.mrb[0].mxu0
      %1062 = vmatprep.mubr.f32.mxu0 0.0
      %1063 = vmatmul.mubr.f32.gmra.mrb[0].mxu0 %v929
      %v1064 = vpop.f32.mrb[0].mxu0
      %v1065 = vadd.f32 0.0, %v1064
      %v1066 = vpop.f32.mrb[0].mxu0
      %1067 = vmatprep.mubr.f32.mxu0 0.0
      %1068 = vmatmul.mubr.f32.gmra.mrb[0].mxu0 %v932
      %v1069 = vpop.f32.mrb[0].mxu0
      %v1070 = vadd.f32 0.0, %v1069
      %v1071 = vpop.f32.mrb[0].mxu0
      %1072 = vmatprep.mubr.f32.mxu0 0.0
      %1073 = vmatmul.mubr.f32.gmra.mrb[0].mxu0 %v935
      %v1074 = vpop.f32.mrb[0].mxu0
      %v1075 = vadd.f32 0.0, %v1074
      %v1076 = vpop.f32.mrb[0].mxu0
      %1077 = vmatprep.mubr.f32.mxu0 0.0
      %1078 = vmatmul.mubr.f32.gmra.mrb[0].mxu0 %v938
      %v1079 = vpop.f32.mrb[0].mxu0
      %v1080 = vadd.f32 0.0, %v1079
      %v1081 = vpop.f32.mrb[0].mxu0
      %1082 = vmatprep.mubr.f32.mxu0 0.0
      %1083 = vmatmul.mubr.f32.gmra.mrb[0].mxu0 %v941
      %v1084 = vpop.f32.mrb[0].mxu0
      %v1085 = vadd.f32 0.0, %v1084
      %v1086 = vpop.f32.mrb[0].mxu0
      %1087 = vmatprep.mubr.f32.mxu0 0.0
      %1088 = vmatmul.mubr.f32.gmra.mrb[0].mxu0 %v944
      %v1089 = vpop.f32.mrb[0].mxu0
      %v1090 = vadd.f32 0.0, %v1089
      %v1091 = vpop.f32.mrb[0].mxu0
      %1092 = vmatprep.mubr.f32.mxu0 0.0
      %1093 = vmatmul.mubr.f32.gmra.mrb[0].mxu0 %v947
      %v1094 = vpop.f32.mrb[0].mxu0
      %v1095 = vadd.f32 0.0, %v1094
      %v1096 = vpop.f32.mrb[0].mxu0
      %1097 = vdwg.mxu0
      %v1099 = vsel %vm900, %v671, 0
      %v1102 = vsel %vm900, %v672, 0
      %v1105 = vsel %vm900, %v673, 0
      %v1108 = vsel %vm900, %v674, 0
      %v1111 = vsel %vm900, %v675, 0
      %v1114 = vsel %vm900, %v676, 0
      %v1117 = vsel %vm900, %v677, 0
      %v1120 = vsel %vm900, %v678, 0
      %v1123 = vsel %vm900, %v679, 0
      %v1126 = vsel %vm900, %v680, 0
      %v1129 = vsel %vm900, %v681, 0
      %v1132 = vsel %vm900, %v682, 0
      %v1135 = vsel %vm900, %v683, 0
      %v1138 = vsel %vm900, %v684, 0
      %v1141 = vsel %vm900, %v685, 0
      %v1144 = vsel %vm900, %v686, 0
      %v1147 = vsel %vm949, %v688, 0
      %1149 = vmatprep.subr.mxu0 0.0
      %1150 = vmatpush1.msra.mxu0 %v687
      %1151 = vmatprep.subr.mxu0 0.0
      %1152 = vmatpush1.msra.mxu0 %v1147
      %1153 = vmatprep.subr.mxu0 0.0
      %1154 = vmatpush1.msra.mxu0 0.0
      %1155 = vmatprep.subr.mxu0 0.0
      %1156 = vmatpush1.msra.mxu0 0.0
      %1157 = vmatprep.subr.mxu0 0.0
      %1158 = vmatpush1.msra.mxu0 0.0
      %1159 = vmatprep.subr.mxu0 0.0
      %1160 = vmatpush1.msra.mxu0 0.0
      %1161 = vmatprep.subr.mxu0 0.0
      %1162 = vmatpush1.msra.mxu0 0.0
      %1163 = vmatprep.subr.mxu0 0.0
      %1164 = vmatpush1.msra.mxu0 0.0
      %1165 = vmatprep.subr.mxu0 0.0
      %1166 = vmatpush1.msra.mxu0 0.0
      %1167 = vmatprep.subr.mxu0 0.0
      %1168 = vmatpush1.msra.mxu0 0.0
      %1169 = vmatprep.subr.mxu0 0.0
      %1170 = vmatpush1.msra.mxu0 0.0
      %1171 = vmatprep.subr.mxu0 0.0
      %1172 = vmatpush1.msra.mxu0 0.0
      %1173 = vmatprep.subr.mxu0 0.0
      %1174 = vmatpush1.msra.mxu0 0.0
      %1175 = vmatprep.subr.mxu0 0.0
      %1176 = vmatpush1.msra.mxu0 0.0
      %1177 = vmatprep.subr.mxu0 0.0
      %1178 = vmatpush1.msra.mxu0 0.0
      %1179 = vmatprep.subr.mxu0 0.0
      %1180 = vmatpush1.msra.mxu0 0.0
      %1181 = vmatprep.subr.mxu0 0.0
      %1182 = vmatpush1.msra.mxu0 0.0
      %1183 = vmatprep.subr.mxu0 0.0
      %1184 = vmatpush1.msra.mxu0 0.0
      %1185 = vmatprep.subr.mxu0 0.0
      %1186 = vmatpush1.msra.mxu0 0.0
      %1187 = vmatprep.subr.mxu0 0.0
      %1188 = vmatpush1.msra.mxu0 0.0
      %1189 = vmatprep.subr.mxu0 0.0
      %1190 = vmatpush1.msra.mxu0 0.0
      %1191 = vmatprep.subr.mxu0 0.0
      %1192 = vmatpush1.msra.mxu0 0.0
      %1193 = vmatprep.subr.mxu0 0.0
      %1194 = vmatpush1.msra.mxu0 0.0
      %1195 = vmatprep.subr.mxu0 0.0
      %1196 = vmatpush1.msra.mxu0 0.0
      %1197 = vmatprep.subr.mxu0 0.0
      %1198 = vmatpush1.msra.mxu0 0.0
      %1199 = vmatprep.subr.mxu0 0.0
      %1200 = vmatpush1.msra.mxu0 0.0
      %1201 = vmatprep.subr.mxu0 0.0
      %1202 = vmatpush1.msra.mxu0 0.0
      %1203 = vmatprep.subr.mxu0 0.0
      %1204 = vmatpush1.msra.mxu0 0.0
      %1205 = vmatprep.subr.mxu0 0.0
      %1206 = vmatpush1.msra.mxu0 0.0
      %1207 = vmatprep.subr.mxu0 0.0
      %1208 = vmatpush1.msra.mxu0 0.0
      %1209 = vmatprep.subr.mxu0 0.0
      %1210 = vmatpush1.msra.mxu0 0.0
      %1211 = vmatprep.subr.mxu0 0.0
      %1212 = vmatpush1.msra.mxu0 0.0
      %1213 = vmatprep.mubr.f32.mxu0 0.0
      %1214 = vmatmul.mubr.f32.gmra.mrb[0].mxu0 %v1099
      %v1215 = vpop.f32.mrb[0].mxu0
      %v1216 = vadd.f32 %v1020, %v1215
      %v1217 = vpop.f32.mrb[0].mxu0
      %1218 = vmatprep.mubr.f32.mxu0 0.0
      %1219 = vmatmul.mubr.f32.gmra.mrb[0].mxu0 %v1102
      %v1220 = vpop.f32.mrb[0].mxu0
      %v1221 = vadd.f32 %v1025, %v1220
      %v1222 = vpop.f32.mrb[0].mxu0
      %1223 = vmatprep.mubr.f32.mxu0 0.0
      %1224 = vmatmul.mubr.f32.gmra.mrb[0].mxu0 %v1105
      %v1225 = vpop.f32.mrb[0].mxu0
      %v1226 = vadd.f32 %v1030, %v1225
      %v1227 = vpop.f32.mrb[0].mxu0
      %1228 = vmatprep.mubr.f32.mxu0 0.0
      %1229 = vmatmul.mubr.f32.gmra.mrb[0].mxu0 %v1108
      %v1230 = vpop.f32.mrb[0].mxu0
      %v1231 = vadd.f32 %v1035, %v1230
      %v1232 = vpop.f32.mrb[0].mxu0
      %1233 = vmatprep.mubr.f32.mxu0 0.0
      %1234 = vmatmul.mubr.f32.gmra.mrb[0].mxu0 %v1111
      %v1235 = vpop.f32.mrb[0].mxu0
      %v1236 = vadd.f32 %v1040, %v1235
      %v1237 = vpop.f32.mrb[0].mxu0
      %1238 = vmatprep.mubr.f32.mxu0 0.0
      %1239 = vmatmul.mubr.f32.gmra.mrb[0].mxu0 %v1114
      %v1240 = vpop.f32.mrb[0].mxu0
      %v1241 = vadd.f32 %v1045, %v1240
      %v1242 = vpop.f32.mrb[0].mxu0
      %1243 = vmatprep.mubr.f32.mxu0 0.0
      %1244 = vmatmul.mubr.f32.gmra.mrb[0].mxu0 %v1117
      %v1245 = vpop.f32.mrb[0].mxu0
      %v1246 = vadd.f32 %v1050, %v1245
      %v1247 = vpop.f32.mrb[0].mxu0
      %1248 = vmatprep.mubr.f32.mxu0 0.0
      %1249 = vmatmul.mubr.f32.gmra.mrb[0].mxu0 %v1120
      %v1250 = vpop.f32.mrb[0].mxu0
      %v1251 = vadd.f32 %v1055, %v1250
      %v1252 = vpop.f32.mrb[0].mxu0
      %1253 = vmatprep.mubr.f32.mxu0 0.0
      %1254 = vmatmul.mubr.f32.gmra.mrb[0].mxu0 %v1123
      %v1255 = vpop.f32.mrb[0].mxu0
      %v1256 = vadd.f32 %v1060, %v1255
      %v1257 = vpop.f32.mrb[0].mxu0
      %1258 = vmatprep.mubr.f32.mxu0 0.0
      %1259 = vmatmul.mubr.f32.gmra.mrb[0].mxu0 %v1126
      %v1260 = vpop.f32.mrb[0].mxu0
      %v1261 = vadd.f32 %v1065, %v1260
      %v1262 = vpop.f32.mrb[0].mxu0
      %1263 = vmatprep.mubr.f32.mxu0 0.0
      %1264 = vmatmul.mubr.f32.gmra.mrb[0].mxu0 %v1129
      %v1265 = vpop.f32.mrb[0].mxu0
      %v1266 = vadd.f32 %v1070, %v1265
      %v1267 = vpop.f32.mrb[0].mxu0
      %1268 = vmatprep.mubr.f32.mxu0 0.0
      %1269 = vmatmul.mubr.f32.gmra.mrb[0].mxu0 %v1132
      %v1270 = vpop.f32.mrb[0].mxu0
      %v1271 = vadd.f32 %v1075, %v1270
      %v1272 = vpop.f32.mrb[0].mxu0
      %1273 = vmatprep.mubr.f32.mxu0 0.0
      %1274 = vmatmul.mubr.f32.gmra.mrb[0].mxu0 %v1135
      %v1275 = vpop.f32.mrb[0].mxu0
      %v1276 = vadd.f32 %v1080, %v1275
      %v1277 = vpop.f32.mrb[0].mxu0
      %1278 = vmatprep.mubr.f32.mxu0 0.0
      %1279 = vmatmul.mubr.f32.gmra.mrb[0].mxu0 %v1138
      %v1280 = vpop.f32.mrb[0].mxu0
      %v1281 = vadd.f32 %v1085, %v1280
      %v1282 = vpop.f32.mrb[0].mxu0
      %1283 = vmatprep.mubr.f32.mxu0 0.0
      %1284 = vmatmul.mubr.f32.gmra.mrb[0].mxu0 %v1141
      %v1285 = vpop.f32.mrb[0].mxu0
      %v1286 = vadd.f32 %v1090, %v1285
      %v1287 = vpop.f32.mrb[0].mxu0
      %1288 = vmatprep.mubr.f32.mxu0 0.0
      %1289 = vmatmul.mubr.f32.gmra.mrb[0].mxu0 %v1144
      %v1290 = vpop.f32.mrb[0].mxu0
      %v1291 = vadd.f32 %v1095, %v1290
      %v1292 = vpop.f32.mrb[0].mxu0
      %1293 = vdwg.mxu0
      %s1294 = scalar_lea.vmem [#allocation2], 48
      %v1295 = vld [vmem:[%s1294] sm:$0xff]
      %v1296 = vld [vmem:[%s1294 + $0x8] sm:$0xff]
      %v1297 = vld [vmem:[%s1294 + $0x18] sm:$0xff]
      %v1298 = vld [vmem:[%s1294 + $0x20] sm:$0xff]
      %v1299 = vld [vmem:[%s1294 + $0x30] sm:$0xff]
      %v1300 = vld [vmem:[%s1294 + $0x38] sm:$0xff]
      %v1301 = vld [vmem:[%s1294 + $0x48] sm:$0xff]
      %v1302 = vld [vmem:[%s1294 + $0x50] sm:$0xff]
      %v1303 = vld [vmem:[%s1294 + $0x60] sm:$0xff]
      %v1304 = vld [vmem:[%s1294 + $0x68] sm:$0xff]
      %v1305 = vld [vmem:[%s1294 + $0x78] sm:$0xff]
      %v1306 = vld [vmem:[%s1294 + $0x80] sm:$0xff]
      %v1307 = vld [vmem:[%s1294 + $0x90] sm:$0xff]
      %v1308 = vld [vmem:[%s1294 + $0x98] sm:$0xff]
      %v1309 = vld [vmem:[%s1294 + $0xa8] sm:$0xff]
      %v1310 = vld [vmem:[%s1294 + $0xb0] sm:$0xff]
      %v1311 = vld [vmem:[%s1294 + $0x1] sm:$0xff]
      %v1312 = vld [vmem:[%s1294 + $0x9] sm:$0xff]
      %v1313 = vld [vmem:[%s1294 + $0x19] sm:$0xff]
      %v1314 = vld [vmem:[%s1294 + $0x21] sm:$0xff]
      %v1315 = vld [vmem:[%s1294 + $0x31] sm:$0xff]
      %v1316 = vld [vmem:[%s1294 + $0x39] sm:$0xff]
      %v1317 = vld [vmem:[%s1294 + $0x49] sm:$0xff]
      %v1318 = vld [vmem:[%s1294 + $0x51] sm:$0xff]
      %v1319 = vld [vmem:[%s1294 + $0x61] sm:$0xff]
      %v1320 = vld [vmem:[%s1294 + $0x69] sm:$0xff]
      %v1321 = vld [vmem:[%s1294 + $0x79] sm:$0xff]
      %v1322 = vld [vmem:[%s1294 + $0x81] sm:$0xff]
      %v1323 = vld [vmem:[%s1294 + $0x91] sm:$0xff]
      %v1324 = vld [vmem:[%s1294 + $0x99] sm:$0xff]
      %v1325 = vld [vmem:[%s1294 + $0xa9] sm:$0xff]
      %v1326 = vld [vmem:[%s1294 + $0xb1] sm:$0xff]
      %v1327 = vld [vmem:[%s1294 + $0x2] sm:$0xff]
      %v1328 = vld [vmem:[%s1294 + $0xa] sm:$0xff]
      %v1329 = vld [vmem:[%s1294 + $0x1a] sm:$0xff]
      %v1330 = vld [vmem:[%s1294 + $0x22] sm:$0xff]
      %v1331 = vld [vmem:[%s1294 + $0x32] sm:$0xff]
      %v1332 = vld [vmem:[%s1294 + $0x3a] sm:$0xff]
      %v1333 = vld [vmem:[%s1294 + $0x4a] sm:$0xff]
      %v1334 = vld [vmem:[%s1294 + $0x52] sm:$0xff]
      %v1335 = vld [vmem:[%s1294 + $0x62] sm:$0xff]
      %v1336 = vld [vmem:[%s1294 + $0x6a] sm:$0xff]
      %v1337 = vld [vmem:[%s1294 + $0x7a] sm:$0xff]
      %v1338 = vld [vmem:[%s1294 + $0x82] sm:$0xff]
      %v1339 = vld [vmem:[%s1294 + $0x92] sm:$0xff]
      %v1340 = vld [vmem:[%s1294 + $0x9a] sm:$0xff]
      %v1341 = vld [vmem:[%s1294 + $0xaa] sm:$0xff]
      %v1342 = vld [vmem:[%s1294 + $0xb2] sm:$0xff]
      %1359 = vrot.lane.b32.xlu0 %v1311, 4
      %v1360 = vpop.permute.xlu0 %1359
      %1361 = vrot.lane.b32.xlu0 %v1312, 4
      %v1362 = vpop.permute.xlu0 %1361
      %1363 = vrot.lane.b32.xlu0 %v1313, 4
      %v1364 = vpop.permute.xlu0 %1363
      %1365 = vrot.lane.b32.xlu0 %v1314, 4
      %v1366 = vpop.permute.xlu0 %1365
      %1367 = vrot.lane.b32.xlu0 %v1315, 4
      %v1368 = vpop.permute.xlu0 %1367
      %1369 = vrot.lane.b32.xlu0 %v1316, 4
      %v1370 = vpop.permute.xlu0 %1369
      %1371 = vrot.lane.b32.xlu0 %v1317, 4
      %v1372 = vpop.permute.xlu0 %1371
      %1373 = vrot.lane.b32.xlu0 %v1318, 4
      %v1374 = vpop.permute.xlu0 %1373
      %1375 = vrot.lane.b32.xlu0 %v1319, 4
      %v1376 = vpop.permute.xlu0 %1375
      %1377 = vrot.lane.b32.xlu0 %v1320, 4
      %v1378 = vpop.permute.xlu0 %1377
      %1379 = vrot.lane.b32.xlu0 %v1321, 4
      %v1380 = vpop.permute.xlu0 %1379
      %1381 = vrot.lane.b32.xlu0 %v1322, 4
      %v1382 = vpop.permute.xlu0 %1381
      %1383 = vrot.lane.b32.xlu0 %v1323, 4
      %v1384 = vpop.permute.xlu0 %1383
      %1385 = vrot.lane.b32.xlu0 %v1324, 4
      %v1386 = vpop.permute.xlu0 %1385
      %1387 = vrot.lane.b32.xlu0 %v1325, 4
      %v1388 = vpop.permute.xlu0 %1387
      %1389 = vrot.lane.b32.xlu0 %v1326, 4
      %v1390 = vpop.permute.xlu0 %1389
      %1423 = vrot.lane.b32.xlu0 %v1327, 8
      %v1424 = vpop.permute.xlu0 %1423
      %1425 = vrot.lane.b32.xlu0 %v1328, 8
      %v1426 = vpop.permute.xlu0 %1425
      %1427 = vrot.lane.b32.xlu0 %v1329, 8
      %v1428 = vpop.permute.xlu0 %1427
      %1429 = vrot.lane.b32.xlu0 %v1330, 8
      %v1430 = vpop.permute.xlu0 %1429
      %1431 = vrot.lane.b32.xlu0 %v1331, 8
      %v1432 = vpop.permute.xlu0 %1431
      %1433 = vrot.lane.b32.xlu0 %v1332, 8
      %v1434 = vpop.permute.xlu0 %1433
      %1435 = vrot.lane.b32.xlu0 %v1333, 8
      %v1436 = vpop.permute.xlu0 %1435
      %1437 = vrot.lane.b32.xlu0 %v1334, 8
      %v1438 = vpop.permute.xlu0 %1437
      %1439 = vrot.lane.b32.xlu0 %v1335, 8
      %v1440 = vpop.permute.xlu0 %1439
      %1441 = vrot.lane.b32.xlu0 %v1336, 8
      %v1442 = vpop.permute.xlu0 %1441
      %1443 = vrot.lane.b32.xlu0 %v1337, 8
      %v1444 = vpop.permute.xlu0 %1443
      %1445 = vrot.lane.b32.xlu0 %v1338, 8
      %v1446 = vpop.permute.xlu0 %1445
      %1447 = vrot.lane.b32.xlu0 %v1339, 8
      %v1448 = vpop.permute.xlu0 %1447
      %1449 = vrot.lane.b32.xlu0 %v1340, 8
      %v1450 = vpop.permute.xlu0 %1449
      %1451 = vrot.lane.b32.xlu0 %v1341, 8
      %v1452 = vpop.permute.xlu0 %1451
      %1453 = vrot.lane.b32.xlu0 %v1342, 8
      %v1454 = vpop.permute.xlu0 %1453
      %v1471 = vsel %vm410, %v1295, %v1360
      %v1472 = vsel %vm410, %v1296, %v1362
      %v1473 = vsel %vm410, %v1297, %v1364
      %v1474 = vsel %vm410, %v1298, %v1366
      %v1475 = vsel %vm410, %v1299, %v1368
      %v1476 = vsel %vm410, %v1300, %v1370
      %v1477 = vsel %vm410, %v1301, %v1372
      %v1478 = vsel %vm410, %v1302, %v1374
      %v1479 = vsel %vm410, %v1303, %v1376
      %v1480 = vsel %vm410, %v1304, %v1378
      %v1481 = vsel %vm410, %v1305, %v1380
      %v1482 = vsel %vm410, %v1306, %v1382
      %v1483 = vsel %vm410, %v1307, %v1384
      %v1484 = vsel %vm410, %v1308, %v1386
      %v1485 = vsel %vm410, %v1309, %v1388
      %v1486 = vsel %vm410, %v1310, %v1390
      %v1487 = vsel %vm670, %v1471, %v1424
      %v1488 = vsel %vm670, %v1472, %v1426
      %v1489 = vsel %vm670, %v1473, %v1428
      %v1490 = vsel %vm670, %v1474, %v1430
      %v1491 = vsel %vm670, %v1475, %v1432
      %v1492 = vsel %vm670, %v1476, %v1434
      %v1493 = vsel %vm670, %v1477, %v1436
      %v1494 = vsel %vm670, %v1478, %v1438
      %v1495 = vsel %vm670, %v1479, %v1440
      %v1496 = vsel %vm670, %v1480, %v1442
      %v1497 = vsel %vm670, %v1481, %v1444
      %v1498 = vsel %vm670, %v1482, %v1446
      %v1499 = vsel %vm670, %v1483, %v1448
      %v1500 = vsel %vm670, %v1484, %v1450
      %v1501 = vsel %vm670, %v1485, %v1452
      %v1502 = vsel %vm670, %v1486, %v1454
      %s1503 = scalar_lea.vmem %s3, 32
      %v1504 = vld [vmem:[%s1503] sm:$0xff]
      %v1505 = vld [vmem:[%s1503 + $0x8] sm:$0xf]
      %v1507 = vsel %vm900, %v1487, 0
      %v1510 = vsel %vm900, %v1488, 0
      %v1513 = vsel %vm900, %v1489, 0
      %v1516 = vsel %vm900, %v1490, 0
      %v1519 = vsel %vm900, %v1491, 0
      %v1522 = vsel %vm900, %v1492, 0
      %v1525 = vsel %vm900, %v1493, 0
      %v1528 = vsel %vm900, %v1494, 0
      %v1531 = vsel %vm900, %v1495, 0
      %v1534 = vsel %vm900, %v1496, 0
      %v1537 = vsel %vm900, %v1497, 0
      %v1540 = vsel %vm900, %v1498, 0
      %v1543 = vsel %vm900, %v1499, 0
      %v1546 = vsel %vm900, %v1500, 0
      %v1549 = vsel %vm900, %v1501, 0
      %v1552 = vsel %vm900, %v1502, 0
      %v1555 = vsel %vm949, %v1505, 0
      %1557 = vmatprep.subr.mxu0 0.0
      %1558 = vmatpush1.msra.mxu0 %v1504
      %1559 = vmatprep.subr.mxu0 0.0
      %1560 = vmatpush1.msra.mxu0 %v1555
      %1561 = vmatprep.subr.mxu0 0.0
      %1562 = vmatpush1.msra.mxu0 0.0
      %1563 = vmatprep.subr.mxu0 0.0
      %1564 = vmatpush1.msra.mxu0 0.0
      %1565 = vmatprep.subr.mxu0 0.0
      %1566 = vmatpush1.msra.mxu0 0.0
      %1567 = vmatprep.subr.mxu0 0.0
      %1568 = vmatpush1.msra.mxu0 0.0
      %1569 = vmatprep.subr.mxu0 0.0
      %1570 = vmatpush1.msra.mxu0 0.0
      %1571 = vmatprep.subr.mxu0 0.0
      %1572 = vmatpush1.msra.mxu0 0.0
      %1573 = vmatprep.subr.mxu0 0.0
      %1574 = vmatpush1.msra.mxu0 0.0
      %1575 = vmatprep.subr.mxu0 0.0
      %1576 = vmatpush1.msra.mxu0 0.0
      %1577 = vmatprep.subr.mxu0 0.0
      %1578 = vmatpush1.msra.mxu0 0.0
      %1579 = vmatprep.subr.mxu0 0.0
      %1580 = vmatpush1.msra.mxu0 0.0
      %1581 = vmatprep.subr.mxu0 0.0
      %1582 = vmatpush1.msra.mxu0 0.0
      %1583 = vmatprep.subr.mxu0 0.0
      %1584 = vmatpush1.msra.mxu0 0.0
      %1585 = vmatprep.subr.mxu0 0.0
      %1586 = vmatpush1.msra.mxu0 0.0
      %1587 = vmatprep.subr.mxu0 0.0
      %1588 = vmatpush1.msra.mxu0 0.0
      %1589 = vmatprep.subr.mxu0 0.0
      %1590 = vmatpush1.msra.mxu0 0.0
      %1591 = vmatprep.subr.mxu0 0.0
      %1592 = vmatpush1.msra.mxu0 0.0
      %1593 = vmatprep.subr.mxu0 0.0
      %1594 = vmatpush1.msra.mxu0 0.0
      %1595 = vmatprep.subr.mxu0 0.0
      %1596 = vmatpush1.msra.mxu0 0.0
      %1597 = vmatprep.subr.mxu0 0.0
      %1598 = vmatpush1.msra.mxu0 0.0
      %1599 = vmatprep.subr.mxu0 0.0
      %1600 = vmatpush1.msra.mxu0 0.0
      %1601 = vmatprep.subr.mxu0 0.0
      %1602 = vmatpush1.msra.mxu0 0.0
      %1603 = vmatprep.subr.mxu0 0.0
      %1604 = vmatpush1.msra.mxu0 0.0
      %1605 = vmatprep.subr.mxu0 0.0
      %1606 = vmatpush1.msra.mxu0 0.0
      %1607 = vmatprep.subr.mxu0 0.0
      %1608 = vmatpush1.msra.mxu0 0.0
      %1609 = vmatprep.subr.mxu0 0.0
      %1610 = vmatpush1.msra.mxu0 0.0
      %1611 = vmatprep.subr.mxu0 0.0
      %1612 = vmatpush1.msra.mxu0 0.0
      %1613 = vmatprep.subr.mxu0 0.0
      %1614 = vmatpush1.msra.mxu0 0.0
      %1615 = vmatprep.subr.mxu0 0.0
      %1616 = vmatpush1.msra.mxu0 0.0
      %1617 = vmatprep.subr.mxu0 0.0
      %1618 = vmatpush1.msra.mxu0 0.0
      %1619 = vmatprep.subr.mxu0 0.0
      %1620 = vmatpush1.msra.mxu0 0.0
      %1621 = vmatprep.mubr.f32.mxu0 0.0
      %1622 = vmatmul.mubr.f32.gmra.mrb[0].mxu0 %v1507
      %v1623 = vpop.f32.mrb[0].mxu0
      %v1624 = vadd.f32 0.0, %v1623
      %v1625 = vpop.f32.mrb[0].mxu0
      %1626 = vmatprep.mubr.f32.mxu0 0.0
      %1627 = vmatmul.mubr.f32.gmra.mrb[0].mxu0 %v1510
      %v1628 = vpop.f32.mrb[0].mxu0
      %v1629 = vadd.f32 0.0, %v1628
      %v1630 = vpop.f32.mrb[0].mxu0
      %1631 = vmatprep.mubr.f32.mxu0 0.0
      %1632 = vmatmul.mubr.f32.gmra.mrb[0].mxu0 %v1513
      %v1633 = vpop.f32.mrb[0].mxu0
      %v1634 = vadd.f32 0.0, %v1633
      %v1635 = vpop.f32.mrb[0].mxu0
      %1636 = vmatprep.mubr.f32.mxu0 0.0
      %1637 = vmatmul.mubr.f32.gmra.mrb[0].mxu0 %v1516
      %v1638 = vpop.f32.mrb[0].mxu0
      %v1639 = vadd.f32 0.0, %v1638
      %v1640 = vpop.f32.mrb[0].mxu0
      %1641 = vmatprep.mubr.f32.mxu0 0.0
      %1642 = vmatmul.mubr.f32.gmra.mrb[0].mxu0 %v1519
      %v1643 = vpop.f32.mrb[0].mxu0
      %v1644 = vadd.f32 0.0, %v1643
      %v1645 = vpop.f32.mrb[0].mxu0
      %1646 = vmatprep.mubr.f32.mxu0 0.0
      %1647 = vmatmul.mubr.f32.gmra.mrb[0].mxu0 %v1522
      %v1648 = vpop.f32.mrb[0].mxu0
      %v1649 = vadd.f32 0.0, %v1648
      %v1650 = vpop.f32.mrb[0].mxu0
      %1651 = vmatprep.mubr.f32.mxu0 0.0
      %1652 = vmatmul.mubr.f32.gmra.mrb[0].mxu0 %v1525
      %v1653 = vpop.f32.mrb[0].mxu0
      %v1654 = vadd.f32 0.0, %v1653
      %v1655 = vpop.f32.mrb[0].mxu0
      %1656 = vmatprep.mubr.f32.mxu0 0.0
      %1657 = vmatmul.mubr.f32.gmra.mrb[0].mxu0 %v1528
      %v1658 = vpop.f32.mrb[0].mxu0
      %v1659 = vadd.f32 0.0, %v1658
      %v1660 = vpop.f32.mrb[0].mxu0
      %1661 = vmatprep.mubr.f32.mxu0 0.0
      %1662 = vmatmul.mubr.f32.gmra.mrb[0].mxu0 %v1531
      %v1663 = vpop.f32.mrb[0].mxu0
      %v1664 = vadd.f32 0.0, %v1663
      %v1665 = vpop.f32.mrb[0].mxu0
      %1666 = vmatprep.mubr.f32.mxu0 0.0
      %1667 = vmatmul.mubr.f32.gmra.mrb[0].mxu0 %v1534
      %v1668 = vpop.f32.mrb[0].mxu0
      %v1669 = vadd.f32 0.0, %v1668
      %v1670 = vpop.f32.mrb[0].mxu0
      %1671 = vmatprep.mubr.f32.mxu0 0.0
      %1672 = vmatmul.mubr.f32.gmra.mrb[0].mxu0 %v1537
      %v1673 = vpop.f32.mrb[0].mxu0
      %v1674 = vadd.f32 0.0, %v1673
      %v1675 = vpop.f32.mrb[0].mxu0
      %1676 = vmatprep.mubr.f32.mxu0 0.0
      %1677 = vmatmul.mubr.f32.gmra.mrb[0].mxu0 %v1540
      %v1678 = vpop.f32.mrb[0].mxu0
      %v1679 = vadd.f32 0.0, %v1678
      %v1680 = vpop.f32.mrb[0].mxu0
      %1681 = vmatprep.mubr.f32.mxu0 0.0
      %1682 = vmatmul.mubr.f32.gmra.mrb[0].mxu0 %v1543
      %v1683 = vpop.f32.mrb[0].mxu0
      %v1684 = vadd.f32 0.0, %v1683
      %v1685 = vpop.f32.mrb[0].mxu0
      %1686 = vmatprep.mubr.f32.mxu0 0.0
      %1687 = vmatmul.mubr.f32.gmra.mrb[0].mxu0 %v1546
      %v1688 = vpop.f32.mrb[0].mxu0
      %v1689 = vadd.f32 0.0, %v1688
      %v1690 = vpop.f32.mrb[0].mxu0
      %1691 = vmatprep.mubr.f32.mxu0 0.0
      %1692 = vmatmul.mubr.f32.gmra.mrb[0].mxu0 %v1549
      %v1693 = vpop.f32.mrb[0].mxu0
      %v1694 = vadd.f32 0.0, %v1693
      %v1695 = vpop.f32.mrb[0].mxu0
      %1696 = vmatprep.mubr.f32.mxu0 0.0
      %1697 = vmatmul.mubr.f32.gmra.mrb[0].mxu0 %v1552
      %v1698 = vpop.f32.mrb[0].mxu0
      %v1699 = vadd.f32 0.0, %v1698
      %v1700 = vpop.f32.mrb[0].mxu0
      %1701 = vdwg.mxu0
      %v1702 = vadd.f32 %v1216, %v1624
      %v1703 = vadd.f32 %v1221, %v1629
      %v1704 = vadd.f32 %v1226, %v1634
      %v1705 = vadd.f32 %v1231, %v1639
      %v1706 = vadd.f32 %v1236, %v1644
      %v1707 = vadd.f32 %v1241, %v1649
      %v1708 = vadd.f32 %v1246, %v1654
      %v1709 = vadd.f32 %v1251, %v1659
      %v1710 = vadd.f32 %v1256, %v1664
      %v1711 = vadd.f32 %v1261, %v1669
      %v1712 = vadd.f32 %v1266, %v1674
      %v1713 = vadd.f32 %v1271, %v1679
      %v1714 = vadd.f32 %v1276, %v1684
      %v1715 = vadd.f32 %v1281, %v1689
      %v1716 = vadd.f32 %v1286, %v1694
      %v1717 = vadd.f32 %v1291, %v1699
      %v1718 = vld [vmem:[%s4] sm:$0x1]
      %v1720 = vlaneseq
      %v1721 = vshrl.u32 %v1720, 7
      %v1722 = vsub.s32 0, %v1721
      %v1723 = vrot.slane %v1718, %v1722
      %v1725 = vadd.f32 %v1702, %v1723
      %v1726 = vadd.f32 %v1703, %v1723
      %v1727 = vadd.f32 %v1704, %v1723
      %v1728 = vadd.f32 %v1705, %v1723
      %v1729 = vadd.f32 %v1706, %v1723
      %v1730 = vadd.f32 %v1707, %v1723
      %v1731 = vadd.f32 %v1708, %v1723
      %v1732 = vadd.f32 %v1709, %v1723
      %v1733 = vadd.f32 %v1710, %v1723
      %v1734 = vadd.f32 %v1711, %v1723
      %v1735 = vadd.f32 %v1712, %v1723
      %v1736 = vadd.f32 %v1713, %v1723
      %v1737 = vadd.f32 %v1714, %v1723
      %v1738 = vadd.f32 %v1715, %v1723
      %v1739 = vadd.f32 %v1716, %v1723
      %v1740 = vadd.f32 %v1717, %v1723
      %1741 = vst.msk [vmem:[%s391] sm:$0xff] %vm670, %v1725
      %1742 = vst.msk [vmem:[%s391 + $0x8] sm:$0xff] %vm670, %v1726
      %1743 = vst.msk [vmem:[%s391 + $0x20] sm:$0xff] %vm670, %v1727
      %1744 = vst.msk [vmem:[%s391 + $0x28] sm:$0xff] %vm670, %v1728
      %1745 = vst.msk [vmem:[%s391 + $0x40] sm:$0xff] %vm670, %v1729
      %1746 = vst.msk [vmem:[%s391 + $0x48] sm:$0xff] %vm670, %v1730
      %1747 = vst.msk [vmem:[%s391 + $0x60] sm:$0xff] %vm670, %v1731
      %1748 = vst.msk [vmem:[%s391 + $0x68] sm:$0xff] %vm670, %v1732
      %1749 = vst.msk [vmem:[%s391 + $0x80] sm:$0xff] %vm670, %v1733
      %1750 = vst.msk [vmem:[%s391 + $0x88] sm:$0xff] %vm670, %v1734
      %1751 = vst.msk [vmem:[%s391 + $0xa0] sm:$0xff] %vm670, %v1735
      %1752 = vst.msk [vmem:[%s391 + $0xa8] sm:$0xff] %vm670, %v1736
      %1753 = vst.msk [vmem:[%s391 + $0xc0] sm:$0xff] %vm670, %v1737
      %1754 = vst.msk [vmem:[%s391 + $0xc8] sm:$0xff] %vm670, %v1738
      %1755 = vst.msk [vmem:[%s391 + $0xe0] sm:$0xff] %vm670, %v1739
      %1756 = vst.msk [vmem:[%s391 + $0xe8] sm:$0xff] %vm670, %v1740
      %1773 = vrot.lane.b32.xlu0 %v1725, 120
      %v1774 = vpop.permute.xlu0 %1773
      %1775 = vrot.lane.b32.xlu0 %v1726, 120
      %v1776 = vpop.permute.xlu0 %1775
      %1777 = vrot.lane.b32.xlu0 %v1727, 120
      %v1778 = vpop.permute.xlu0 %1777
      %1779 = vrot.lane.b32.xlu0 %v1728, 120
      %v1780 = vpop.permute.xlu0 %1779
      %1781 = vrot.lane.b32.xlu0 %v1729, 120
      %v1782 = vpop.permute.xlu0 %1781
      %1783 = vrot.lane.b32.xlu0 %v1730, 120
      %v1784 = vpop.permute.xlu0 %1783
      %1785 = vrot.lane.b32.xlu0 %v1731, 120
      %v1786 = vpop.permute.xlu0 %1785
      %1787 = vrot.lane.b32.xlu0 %v1732, 120
      %v1788 = vpop.permute.xlu0 %1787
      %1789 = vrot.lane.b32.xlu0 %v1733, 120
      %v1790 = vpop.permute.xlu0 %1789
      %1791 = vrot.lane.b32.xlu0 %v1734, 120
      %v1792 = vpop.permute.xlu0 %1791
      %1793 = vrot.lane.b32.xlu0 %v1735, 120
      %v1794 = vpop.permute.xlu0 %1793
      %1795 = vrot.lane.b32.xlu0 %v1736, 120
      %v1796 = vpop.permute.xlu0 %1795
      %1797 = vrot.lane.b32.xlu0 %v1737, 120
      %v1798 = vpop.permute.xlu0 %1797
      %1799 = vrot.lane.b32.xlu0 %v1738, 120
      %v1800 = vpop.permute.xlu0 %1799
      %1801 = vrot.lane.b32.xlu0 %v1739, 120
      %v1802 = vpop.permute.xlu0 %1801
      %1803 = vrot.lane.b32.xlu0 %v1740, 120
      %v1804 = vpop.permute.xlu0 %1803
      %s1821 = scalar_lea.vmem %s391, 16
      %1822 = vst.msk [vmem:[%s1821] sm:$0xff] %vm670, %v1774
      %1823 = vst.msk [vmem:[%s1821 + $0x8] sm:$0xff] %vm670, %v1776
      %1824 = vst.msk [vmem:[%s1821 + $0x20] sm:$0xff] %vm670, %v1778
      %1825 = vst.msk [vmem:[%s1821 + $0x28] sm:$0xff] %vm670, %v1780
      %1826 = vst.msk [vmem:[%s1821 + $0x40] sm:$0xff] %vm670, %v1782
      %1827 = vst.msk [vmem:[%s1821 + $0x48] sm:$0xff] %vm670, %v1784
      %1828 = vst.msk [vmem:[%s1821 + $0x60] sm:$0xff] %vm670, %v1786
      %1829 = vst.msk [vmem:[%s1821 + $0x68] sm:$0xff] %vm670, %v1788
      %1830 = vst.msk [vmem:[%s1821 + $0x80] sm:$0xff] %vm670, %v1790
      %1831 = vst.msk [vmem:[%s1821 + $0x88] sm:$0xff] %vm670, %v1792
      %1832 = vst.msk [vmem:[%s1821 + $0xa0] sm:$0xff] %vm670, %v1794
      %1833 = vst.msk [vmem:[%s1821 + $0xa8] sm:$0xff] %vm670, %v1796
      %1834 = vst.msk [vmem:[%s1821 + $0xc0] sm:$0xff] %vm670, %v1798
      %1835 = vst.msk [vmem:[%s1821 + $0xc8] sm:$0xff] %vm670, %v1800
      %1836 = vst.msk [vmem:[%s1821 + $0xe0] sm:$0xff] %vm670, %v1802
      %1837 = vst.msk [vmem:[%s1821 + $0xe8] sm:$0xff] %vm670, %v1804
      %s1838 = smul.u32 8, %s21
      %p1839 = scmp.lt.s32.totalorder %s20, 1
      %s1840 = scalar_select %p1839, %s20, 1
      %p1841 = scmp.lt.s32.totalorder %s1838, 15
      %s1842 = scalar_select %p1841, %s1838, 15
      %s1843 = smul.addr %s1842, 4
      %s1844 = smul.addr %s1840, 64
      %s1845 = sadd.s32 %s1843, %s1844
      %s1846 = smul.addr %s1845, 8
      %s1847 = scalar_lea.vmem %s5, %s1846
      // Predicated region
      $region57: #{tpu_custom_call.1} parent=39 // pred_check
        %p1848 = pneg %p190
      $region58: #{tpu_custom_call.1} parent=39 // pred_check_branch
        %1850 = sbr.rel (%p1848) target = $region60
      $region59: #{tpu_custom_call.1} parent=39 // pred_region
        %s1851 = smul.u32 8, %s21
      $region60: #{tpu_custom_call.1} parent=39 // pred_fallthru
        _
    $region40: #{tpu_custom_call.1} parent=5 // pred_fallthru
      _
    %p1852 = scmp.le.s32.totalorder 2, %s11
    // Predicated region
    $region61: #{tpu_custom_call.1} parent=5 // pred_check
      %p1853 = pneg %p1852
    $region62: #{tpu_custom_call.1} parent=5 // pred_check_branch
      %1855 = sbr.rel (%p1853) target = $region64
    $region63: #{tpu_custom_call.1} parent=5 // pred_region
      %s1856 = ssub.s32 %s11, 2
      // Predicated region
      $region65: #{tpu_custom_call.1} parent=63 // pred_check
        %p1857 = pneg %p196
      $region66: #{tpu_custom_call.1} parent=63 // pred_check_branch
        %1859 = sbr.rel (%p1857) target = $region68
      $region67: #{tpu_custom_call.1} parent=63 // pred_region
        %s1860 = smul.u32 8, %s23
        %p1861 = scmp.lt.s32.totalorder %s22, 1
        %s1862 = scalar_select %p1861, %s22, 1
        %p1863 = scmp.lt.s32.totalorder %s1860, 15
        %s1864 = scalar_select %p1863, %s1860, 15
        %s1865 = smul.addr %s1864, 4
        %s1866 = smul.addr %s1862, 64
        %s1867 = sadd.s32 %s1865, %s1866
        %s1868 = smul.addr %s1867, 8
        %s1869 = scalar_lea.vmem %s5, %s1868
      $region68: #{tpu_custom_call.1} parent=63 // pred_fallthru
        _
    $region64: #{tpu_custom_call.1} parent=5 // pred_fallthru
      _
  $region6: #{tpu_custom_call.1} parent=0 // loop_footer
    %s15 = sadd.s32 1, %s11
  $region7: #{tpu_custom_call.1} parent=0 // loop_footer_branch
    %10 = sbr.rel target = $region3
  $region8: #{tpu_custom_call.1} parent=0 // loop_exit
    _

</llo_original>
